<compile_context>
chip_gen: v5e
topology: v5e:2x2
jax: 0.10.0
libtpu: 0.0.40
codegen_flags: <defaults>
</compile_context>

<pallas_src>
from functools import partial

import numpy as np
import jax
import jax.numpy as jnp
from jax import lax
from jax.experimental import pallas as pl
from jax.experimental.pallas import tpu as pltpu


# ----------------------------------------------------------------------------
# Anchor generation (numpy glue, identical to py-faster-rcnn generate_anchors)
# ----------------------------------------------------------------------------
def _whctrs(anchor):
    w = anchor[2] - anchor[0] + 1
    h = anchor[3] - anchor[1] + 1
    x_ctr = anchor[0] + 0.5 * (w - 1)
    y_ctr = anchor[1] + 0.5 * (h - 1)
    return w, h, x_ctr, y_ctr


def _mkanchors(ws, hs, x_ctr, y_ctr):
    ws = ws[:, None]
    hs = hs[:, None]
    return np.hstack((x_ctr - 0.5 * (ws - 1), y_ctr - 0.5 * (hs - 1),
                      x_ctr + 0.5 * (ws - 1), y_ctr + 0.5 * (hs - 1)))


def _ratio_enum(anchor, ratios):
    w, h, x_ctr, y_ctr = _whctrs(anchor)
    size = w * h
    size_ratios = size / ratios
    ws = np.round(np.sqrt(size_ratios))
    hs = np.round(ws * ratios)
    return _mkanchors(ws, hs, x_ctr, y_ctr)


def _scale_enum(anchor, scales):
    w, h, x_ctr, y_ctr = _whctrs(anchor)
    ws = w * scales
    hs = h * scales
    return _mkanchors(ws, hs, x_ctr, y_ctr)


def generate_anchors(base_size=16, ratios=np.array([0.5, 1, 2]),
                     scales=2 ** np.arange(3, 6)):
    base_anchor = np.array([1, 1, base_size, base_size], dtype=np.float64) - 1
    ratio_anchors = _ratio_enum(base_anchor, ratios)
    return np.vstack([_scale_enum(ratio_anchors[i, :], scales)
                      for i in range(ratio_anchors.shape[0])])


def build_all_anchors(feat_h, feat_w, feat_stride, scales, ratios):
    base_anchors = generate_anchors(scales=np.array(scales, dtype=np.float64),
                                    ratios=np.array(ratios, dtype=np.float64))
    A = base_anchors.shape[0]
    shift_x = np.arange(0, feat_w) * feat_stride
    shift_y = np.arange(0, feat_h) * feat_stride
    sx, sy = np.meshgrid(shift_x, shift_y)
    shifts = np.vstack((sx.ravel(), sy.ravel(),
                        sx.ravel(), sy.ravel())).transpose()
    all_anchors = (base_anchors.reshape(1, A, 4) +
                   shifts.reshape(-1, 1, 4)).reshape(-1, 4)
    return all_anchors.astype(np.float32), A


# ----------------------------------------------------------------------------
# Crowdsourcing helpers (Beta/Dirichlet posterior means) -- tiny glue
# ----------------------------------------------------------------------------
def get_alpha(alpha_con):
    return alpha_con / jnp.sum(alpha_con, axis=-1, keepdims=True)


def get_sensitivity(alpha):   # P(annotator says fg | true fg)
    return alpha[:, 0, 0]


def get_specificity(alpha):   # P(annotator says bg | true bg)
    return alpha[:, 1, 0]


def _round_up(x, m):
    return ((x + m - 1) // m) * m


# ----------------------------------------------------------------------------
# Cached, grid-invariant per-anchor slab: rows = x1, y1, x2, y2, area, 0, 0, 0.
# Padded lanes get coords -1e8 (fail the inside test) and area 1 (degenerate).
# ----------------------------------------------------------------------------
_SLAB_CACHE = {}


def _get_anchor_slab(H, W, feat_stride, scales, ratios, n_pad):
    key = (H, W, int(feat_stride), tuple(scales), tuple(ratios), int(n_pad))
    slab = _SLAB_CACHE.get(key)
    if slab is None:
        all_anchors, A = build_all_anchors(H, W, feat_stride, scales, ratios)
        N = all_anchors.shape[0]
        assert N == A * H * W and N <= n_pad
        s = np.zeros((8, n_pad), np.float32)
        s[0:4, :] = -1e8
        s[4, :] = 1.0
        s[0, :N] = all_anchors[:, 0]
        s[1, :N] = all_anchors[:, 1]
        s[2, :N] = all_anchors[:, 2]
        s[3, :N] = all_anchors[:, 3]
        s[4, :N] = ((all_anchors[:, 2] - all_anchors[:, 0] + 1.0) *
                    (all_anchors[:, 3] - all_anchors[:, 1] + 1.0))
        slab = jnp.asarray(s)                 # uploaded once, cached on device
        _SLAB_CACHE[key] = slab
    return slab


# ----------------------------------------------------------------------------
# Pallas kernel: grid = (B,); in-kernel streaming argmax over anchor chunks
# ----------------------------------------------------------------------------
def _rpn_agg_kernel(sens_ref, spec_ref, imhw_ref, slab_ref, gt_ref, prob_ref,
                    crowd_ref, out_ref, run_max_ref, run_p_ref, *,
                    n_chunks, chunk_n):
    G = gt_ref.shape[1]
    R = crowd_ref.shape[2]

    # per-batch accumulators (each grid step is an independent batch element)
    run_max_ref[...] = jnp.full(run_max_ref.shape, -jnp.inf, run_max_ref.dtype)
    run_p_ref[...] = jnp.zeros(run_p_ref.shape, run_p_ref.dtype)

    im_h = imhw_ref[0]
    im_w = imhw_ref[1]

    gt = gt_ref[0]                                        # (G, 5)
    gx1 = gt[:, 0:1]
    gy1 = gt[:, 1:2]
    gx2 = gt[:, 2:3]
    gy2 = gt[:, 3:4]
    g_area = (gx2 - gx1 + 1.0) * (gy2 - gy1 + 1.0)        # (G, 1)
    g_zero = (g_area == 1.0)

    # chunk-local lane iota, hoisted out of the loop (JAX doesn't CSE it)
    lane = lax.broadcasted_iota(jnp.int32, (1, chunk_n), 1).astype(jnp.float32)

    @pl.loop(0, n_chunks)
    def _chunk(i):
        off = pl.multiple_of(i * chunk_n, chunk_n)
        anc = slab_ref[:, pl.ds(off, chunk_n)]            # (8, chunk_n)
        ax1 = anc[0:1]
        ay1 = anc[1:2]
        ax2 = anc[2:3]
        ay2 = anc[3:4]
        a_area = anc[4:5]

        # inside-image test (reference uses im_info[0] for every batch elem)
        keep = ((ax1 >= 0.0) & (ay1 >= 0.0) & (ax2 < im_w) & (ay2 < im_h))
        # +1e30 pass-through, -1 degenerate anchor, -1e30 outside / padded
        cap = jnp.where(keep,
                        jnp.where(a_area == 1.0, jnp.float32(-1.0),
                                  jnp.float32(1e30)),
                        jnp.float32(-1e30))               # (1, chunk_n)

        # bbox_overlaps_batch (IoU with the +1 pixel convention), fused
        inter = (jnp.maximum(jnp.minimum(ax2, gx2) - jnp.maximum(ax1, gx1)
                             + 1.0, 0.0) *
                 jnp.maximum(jnp.minimum(ay2, gy2) - jnp.maximum(ay1, gy1)
                             + 1.0, 0.0))
        ov = inter / (a_area + g_area - inter)            # exact: tie fidelity
        ov = jnp.where(g_zero, 0.0, ov)                   # zero-padded gt rows
        ov = jnp.minimum(ov, cap)                         # (G, chunk_n)

        # first-occurrence argmax over the chunk + fg-prob gather
        tile_max = jnp.max(ov, axis=-1, keepdims=True)                 # (G, 1)
        idx = jnp.min(jnp.where(ov == tile_max, lane, jnp.float32(1e9)),
                      axis=-1, keepdims=True)                          # (G, 1)
        probs = prob_ref[:, :, pl.ds(off, chunk_n)][0]                 # (1, C)
        tile_p = jnp.sum(jnp.where(lane == idx, probs, 0.0),
                         axis=-1, keepdims=True)                       # (G, 1)

        # streaming update; strict ">" keeps the earlier (lower-index) chunk
        better = tile_max > run_max_ref[...]
        run_p_ref[...] = jnp.where(better, tile_p, run_p_ref[...])
        run_max_ref[...] = jnp.where(better, tile_max, run_max_ref[...])

    # Dawid-Skene binary aggregation + gating of the gt boxes
    p = run_p_ref[...]                                    # (G, 1)
    cs = crowd_ref[0]                                     # (G, R)
    a = jnp.ones((G, 1), jnp.float32)
    b = jnp.ones((G, 1), jnp.float32)
    for r in range(R):                                    # R is small; unrolled
        y = cs[:, r:r + 1]
        s = sens_ref[r]
        t = spec_ref[r]
        a = a * (y * s + (1.0 - y) * (1.0 - s))
        b = b * (y * (1.0 - t) + (1.0 - y) * t)
    mu = (a * p) / (a * p + b * (1.0 - p))                # (G, 1)
    out_ref[0] = jnp.where(mu < 0.5, 0.0, gt)
    # TODO(synk): update_alpha_con_rpn mutates alpha_con in place; the exact
    # count-update rule is not part of the provided source, so it is omitted.


# ----------------------------------------------------------------------------
# Wrapper
# ----------------------------------------------------------------------------
def rpn_aggregation_forward(inputs, feat_stride, scales, ratios, chunk_n=1024):
    (rpn_cls_prob, gt_boxes, num_boxes, im_info,
     crowdsourced_classes, alpha_con) = inputs
    del num_boxes  # unused by the reference forward pass as well

    B, G = gt_boxes.shape[0], gt_boxes.shape[1]
    R = crowdsourced_classes.shape[2]
    H, W = rpn_cls_prob.shape[2], rpn_cls_prob.shape[3]
    A = len(scales) * len(ratios)
    assert rpn_cls_prob.shape[1] == 2 * A
    N = A * H * W

    # lane-chunking: 128-aligned, bounded so (G, chunk) temporaries stay small
    chunk_n = max(128, (int(chunk_n) // 128) * 128)
    max_chunk = max(128, (16384 // max(int(G), 1)) // 128 * 128)
    chunk_n = min(chunk_n, max_chunk)
    n_pad = _round_up(N, chunk_n)
    n_chunks = n_pad // chunk_n

    # grid-invariant anchor slab, cached on device across calls
    slab = _get_anchor_slab(H, W, feat_stride, scales, ratios, n_pad)

    # Reference behaviour: inside-image test uses im_info[0] for every batch
    # element (long() truncation == floor for positive sizes).
    im_hw = jnp.floor(im_info[0, :2].astype(jnp.float32))     # [im_h, im_w]

    alpha = get_alpha(alpha_con.astype(jnp.float32))
    sens = get_sensitivity(alpha)                             # (R,)
    spec = get_specificity(alpha)                             # (R,)

    # Free, contiguous reshape: row 2*b+1 is rpn_cls_prob.view(B,2,-1)[b,1,:].
    # The fg half is selected purely via the BlockSpec index_map; no wrapper
    # slice/pad copy is materialized in HBM.
    probs = rpn_cls_prob.astype(jnp.float32).reshape(B * 2, 1, N)

    kernel = partial(_rpn_agg_kernel, n_chunks=n_chunks, chunk_n=chunk_n)
    out = pl.pallas_call(
        kernel,
        out_shape=jax.ShapeDtypeStruct((B, G, 5), jnp.float32),
        grid=(B,),
        in_specs=[
            pl.BlockSpec(memory_space=pltpu.MemorySpace.SMEM),     # sens (R,)
            pl.BlockSpec(memory_space=pltpu.MemorySpace.SMEM),     # spec (R,)
            pl.BlockSpec(memory_space=pltpu.MemorySpace.SMEM),     # im_hw (2,)
            pl.BlockSpec((8, n_pad), lambda b: (0, 0)),            # slab (resident)
            pl.BlockSpec((1, G, 5), lambda b: (b, 0, 0)),          # gt boxes
            pl.BlockSpec((1, 1, n_pad), lambda b: (2 * b + 1, 0, 0)),  # fg probs
            pl.BlockSpec((1, G, R), lambda b: (b, 0, 0)),          # crowd labels
        ],
        out_specs=pl.BlockSpec((1, G, 5), lambda b: (b, 0, 0)),
        scratch_shapes=[pltpu.VMEM((G, 1), jnp.float32),   # running max IoU
                        pltpu.VMEM((G, 1), jnp.float32)],  # prob at running argmax
        compiler_params=pltpu.CompilerParams(
            dimension_semantics=("parallel",)),
    )(sens, spec, im_hw, slab, gt_boxes.astype(jnp.float32), probs,
      crowdsourced_classes.astype(jnp.float32))
    return out


# ----------------------------------------------------------------------------
# Pure numpy reference (mirrors the PyTorch forward, incl. inds_inside filter)
# ----------------------------------------------------------------------------
def reference_forward_np(rpn_cls_prob, gt_boxes, im_info, crowd, sens, spec,
                         all_anchors):
    rpn_cls_prob = np.asarray(rpn_cls_prob, np.float32)
    gt_boxes = np.asarray(gt_boxes, np.float32)
    crowd = np.asarray(crowd, np.float32)
    sens = np.asarray(sens, np.float32)
    spec = np.asarray(spec, np.float32)
    im_info = np.asarray(im_info, np.float32)
    B, G, _ = gt_boxes.shape
    keep = ((all_anchors[:, 0] >= 0) & (all_anchors[:, 1] >= 0) &
            (all_anchors[:, 2] < int(im_info[0][1])) &
            (all_anchors[:, 3] < int(im_info[0][0])))
    inds = np.nonzero(keep)[0]
    anchors = all_anchors[inds]
    fg = rpn_cls_prob.reshape(B, 2, -1)[:, 1, :]
    out = gt_boxes.copy()
    for bi in range(B):
        gt = gt_boxes[bi]
        a_area = ((anchors[:, 2] - anchors[:, 0] + 1) *
                  (anchors[:, 3] - anchors[:, 1] + 1))[:, None]
        g_area = ((gt[:, 2] - gt[:, 0] + 1) * (gt[:, 3] - gt[:, 1] + 1))[None, :]
        iw = (np.minimum(anchors[:, 2][:, None], gt[:, 2][None, :]) -
              np.maximum(anchors[:, 0][:, None], gt[:, 0][None, :]) + 1)
        ih = (np.minimum(anchors[:, 3][:, None], gt[:, 3][None, :]) -
              np.maximum(anchors[:, 1][:, None], gt[:, 1][None, :]) + 1)
        iw = np.maximum(iw, 0.0)
        ih = np.maximum(ih, 0.0)
        inter = iw * ih
        ov = inter / (a_area + g_area - inter)
        ov = np.where(np.broadcast_to(g_area == 1, ov.shape), 0.0, ov)
        ov = np.where(a_area == 1, -1.0, ov)
        arg = ov.argmax(axis=0)
        index = inds[arg]
        p = fg[bi, index]
        a = np.ones(G, np.float32)
        b = np.ones(G, np.float32)
        for r in range(crowd.shape[2]):
            y = crowd[bi, :, r]
            a = a * (y * sens[r] + (1 - y) * (1 - sens[r]))
            b = b * (y * (1 - spec[r]) + (1 - y) * spec[r])
        mu = a * p / (a * p + b * (1 - p))
        out[bi][mu < 0.5] = 0.0
    return out


# ----------------------------------------------------------------------------
if __name__ == "__main__":
    feat_stride = 16
    scales = (2, 4)
    ratios = (0.5, 1, 2)
    n_classes = 3
    B, G, R, H, W = 2, 8, 5, 16, 16
    A = len(scales) * len(ratios)            # 6 anchors per location

    key = jax.random.PRNGKey(0)
    k1, k2, k3, k4, k5, k6 = jax.random.split(key, 6)

    rpn_cls_prob = jax.random.uniform(k1, (B, 2 * A, H, W), dtype=jnp.float32)
    x1 = jax.random.uniform(k2, (B, G, 1), minval=0.0, maxval=170.0)
    y1 = jax.random.uniform(k3, (B, G, 1), minval=0.0, maxval=170.0)
    wh = jax.random.uniform(k4, (B, G, 2), minval=20.0, maxval=70.0)
    cls = jnp.floor(jax.random.uniform(k5, (B, G, 1), minval=1.0,
                                       maxval=float(n_classes)))
    gt_boxes = jnp.concatenate(
        [x1, y1, x1 + wh[..., 0:1], y1 + wh[..., 1:2], cls], axis=-1)
    gt_boxes = gt_boxes.astype(jnp.float32)

    num_boxes = jnp.full((B,), G, dtype=jnp.int32)
    im_info = jnp.array([[256.0, 256.0, 1.0]] * B, dtype=jnp.float32)
    crowdsourced_classes = (jax.random.uniform(k6, (B, G, R)) < 0.6
                            ).astype(jnp.float32)
    # deterministic Dirichlet/Beta concentration parameters (R, 2, 2)
    alpha_con = jnp.stack(
        [jnp.stack([jnp.array([8.0 + r, 2.0]),
                    jnp.array([7.0, 2.0 + r])]) for r in range(R)]
    ).astype(jnp.float32)

    inputs = (rpn_cls_prob, gt_boxes, num_boxes, im_info,
              crowdsourced_classes, alpha_con)

    # chunk_n=512 => 3 in-kernel anchor chunks (N = 1536), exercising the
    # streaming argmax path while keeping the demo fg-prob block exact.
    out = rpn_aggregation_forward(inputs, feat_stride, scales, ratios,
                                  chunk_n=512)
    out = jax.block_until_ready(out)

    # sanity check against a pure numpy re-implementation of the torch forward
    all_anchors, _ = build_all_anchors(H, W, feat_stride, scales, ratios)
    alpha = get_alpha(alpha_con)
    ref = reference_forward_np(np.asarray(rpn_cls_prob), np.asarray(gt_boxes),
                               np.asarray(im_info),
                               np.asarray(crowdsourced_classes),
                               np.asarray(get_sensitivity(alpha)),
                               np.asarray(get_specificity(alpha)),
                               all_anchors)
    assert np.allclose(np.asarray(out), ref, atol=1e-3), "mismatch vs reference"

    print("KERNEL_OK")
</pallas_src>

<mosaic_0001>
module attributes {stable_mosaic.version = 11 : i64} {
  func.func @_rpn_agg_kernel(%arg0: i32, %arg1: memref<5xf32, #tpu.memory_space<smem>>, %arg2: memref<5xf32, #tpu.memory_space<smem>>, %arg3: memref<2xf32, #tpu.memory_space<smem>>, %arg4: memref<8x1536xf32, #tpu.memory_space<vmem>>, %arg5: memref<1x8x5xf32, #tpu.memory_space<vmem>>, %arg6: memref<1x1x1536xf32, #tpu.memory_space<vmem>>, %arg7: memref<1x8x5xf32, #tpu.memory_space<vmem>>, %arg8: memref<1x8x5xf32, #tpu.memory_space<vmem>>, %arg9: memref<8x1xf32, #tpu.memory_space<vmem>>, %arg10: memref<8x1xf32, #tpu.memory_space<vmem>>) attributes {dimension_semantics = [#tpu.dimension_semantics<parallel>], iteration_bounds = array<i64: 2>, scalar_prefetch = 0 : i64, scratch_operands = 2 : i64, tpu.core_type = #tpu.core_type<tc>, window_params = [{transform_indices = @transform_0, window_bounds = array<i64: 5>}, {transform_indices = @transform_1, window_bounds = array<i64: 5>}, {transform_indices = @transform_2, window_bounds = array<i64: 2>}, {pipeline_mode = #tpu.pipeline_mode<synchronous>, transform_indices = @transform_3, window_bounds = array<i64: 8, 1536>}, {transform_indices = @transform_4, window_bounds = array<i64: 1, 8, 5>}, {transform_indices = @transform_5, window_bounds = array<i64: 1, 1, 1536>}, {transform_indices = @transform_6, window_bounds = array<i64: 1, 8, 5>}, {transform_indices = @transform_7, window_bounds = array<i64: 1, 8, 5>}]} {
    %cst = arith.constant 0xFF800000 : f32
    %0 = vector.broadcast %cst : f32 to vector<8x1xf32>
    %c0 = arith.constant 0 : index
    %c0_0 = arith.constant 0 : index
    %1 = vector.load %arg9[%c0, %c0_0] : memref<8x1xf32, #tpu.memory_space<vmem>>, vector<8x1xf32>
    tpu.vector_store %arg9[%c0, %c0_0], %0 {strides = array<i32>} : memref<8x1xf32, #tpu.memory_space<vmem>>, vector<8x1xf32>,
    %cst_1 = arith.constant 0.000000e+00 : f32
    %2 = vector.broadcast %cst_1 : f32 to vector<8x1xf32>
    %c0_2 = arith.constant 0 : index
    %c0_3 = arith.constant 0 : index
    %3 = vector.load %arg10[%c0_2, %c0_3] : memref<8x1xf32, #tpu.memory_space<vmem>>, vector<8x1xf32>
    tpu.vector_store %arg10[%c0_2, %c0_3], %2 {strides = array<i32>} : memref<8x1xf32, #tpu.memory_space<vmem>>, vector<8x1xf32>,
    %c0_4 = arith.constant 0 : index
    %4 = memref.load %arg3[%c0_4] : memref<2xf32, #tpu.memory_space<smem>>
    %c1 = arith.constant 1 : index
    %5 = memref.load %arg3[%c1] : memref<2xf32, #tpu.memory_space<smem>>
    %c0_5 = arith.constant 0 : index
    %c0_6 = arith.constant 0 : index
    %c0_7 = arith.constant 0 : index
    %6 = vector.load %arg5[%c0_5, %c0_6, %c0_7] : memref<1x8x5xf32, #tpu.memory_space<vmem>>, vector<1x8x5xf32>
    %7 = vector.shape_cast %6 : vector<1x8x5xf32> to vector<8x5xf32>
    %8 = vector.extract_strided_slice %7 {offsets = [0, 0], sizes = [8, 1], strides = [1, 1]} : vector<8x5xf32> to vector<8x1xf32>
    %9 = vector.extract_strided_slice %7 {offsets = [0, 1], sizes = [8, 1], strides = [1, 1]} : vector<8x5xf32> to vector<8x1xf32>
    %10 = vector.extract_strided_slice %7 {offsets = [0, 2], sizes = [8, 1], strides = [1, 1]} : vector<8x5xf32> to vector<8x1xf32>
    %11 = vector.extract_strided_slice %7 {offsets = [0, 3], sizes = [8, 1], strides = [1, 1]} : vector<8x5xf32> to vector<8x1xf32>
    %12 = arith.subf %10, %8 : vector<8x1xf32>
    %cst_8 = arith.constant 1.000000e+00 : f32
    %13 = vector.broadcast %cst_8 : f32 to vector<8x1xf32>
    %14 = arith.addf %12, %13 : vector<8x1xf32>
    %15 = arith.subf %11, %9 : vector<8x1xf32>
    %cst_9 = arith.constant 1.000000e+00 : f32
    %16 = vector.broadcast %cst_9 : f32 to vector<8x1xf32>
    %17 = arith.addf %15, %16 : vector<8x1xf32>
    %18 = arith.mulf %14, %17 : vector<8x1xf32>
    %cst_10 = arith.constant 1.000000e+00 : f32
    %19 = vector.broadcast %cst_10 : f32 to vector<8x1xf32>
    %20 = arith.cmpf oeq, %18, %19 : vector<8x1xf32>
    %21 = tpu.iota {dimensions = array<i32: 1>} : vector<1x512xi32>
    %22 = arith.sitofp %21 : vector<1x512xi32> to vector<1x512xf32>
    %c0_i32 = arith.constant 0 : i32
    %c3_i32 = arith.constant 3 : i32
    %23 = arith.addi %c0_i32, %c3_i32 : i32
    %c1_i32 = arith.constant 1 : i32
    scf.for %arg11 = %c0_i32 to %23 step %c1_i32  : i32 {
      %c1_i32_52 = arith.constant 1 : i32
      %150 = arith.muli %arg11, %c1_i32_52 : i32
      %c0_i32_53 = arith.constant 0 : i32
      %151 = arith.addi %c0_i32_53, %150 : i32
      %c512_i32 = arith.constant 512 : i32
      %152 = arith.muli %151, %c512_i32 : i32
      %153 = tpu.assume_multiple %152, 512 : i32
      %c0_54 = arith.constant 0 : index
      %154 = arith.index_cast %153 : i32 to index
      %155 = vector.load %arg4[%c0_54, %154] : memref<8x1536xf32, #tpu.memory_space<vmem>>, vector<8x512xf32>
      %156 = vector.extract_strided_slice %155 {offsets = [0, 0], sizes = [1, 512], strides = [1, 1]} : vector<8x512xf32> to vector<1x512xf32>
      %157 = vector.extract_strided_slice %155 {offsets = [1, 0], sizes = [1, 512], strides = [1, 1]} : vector<8x512xf32> to vector<1x512xf32>
      %158 = vector.extract_strided_slice %155 {offsets = [2, 0], sizes = [1, 512], strides = [1, 1]} : vector<8x512xf32> to vector<1x512xf32>
      %159 = vector.extract_strided_slice %155 {offsets = [3, 0], sizes = [1, 512], strides = [1, 1]} : vector<8x512xf32> to vector<1x512xf32>
      %160 = vector.extract_strided_slice %155 {offsets = [4, 0], sizes = [1, 512], strides = [1, 1]} : vector<8x512xf32> to vector<1x512xf32>
      %cst_55 = arith.constant 0.000000e+00 : f32
      %161 = vector.broadcast %cst_55 : f32 to vector<1x512xf32>
      %162 = arith.cmpf oge, %156, %161 : vector<1x512xf32>
      %cst_56 = arith.constant 0.000000e+00 : f32
      %163 = vector.broadcast %cst_56 : f32 to vector<1x512xf32>
      %164 = arith.cmpf oge, %157, %163 : vector<1x512xf32>
      %165 = arith.andi %162, %164 : vector<1x512xi1>
      %166 = vector.broadcast %5 : f32 to vector<1x512xf32>
      %167 = arith.cmpf olt, %158, %166 : vector<1x512xf32>
      %168 = arith.andi %165, %167 : vector<1x512xi1>
      %169 = vector.broadcast %4 : f32 to vector<1x512xf32>
      %170 = arith.cmpf olt, %159, %169 : vector<1x512xf32>
      %171 = arith.andi %168, %170 : vector<1x512xi1>
      %cst_57 = arith.constant 1.000000e+00 : f32
      %172 = vector.broadcast %cst_57 : f32 to vector<1x512xf32>
      %173 = arith.cmpf oeq, %160, %172 : vector<1x512xf32>
      %cst_58 = arith.constant -1.000000e+00 : f32
      %cst_59 = arith.constant 1.000000e+30 : f32
      %174 = vector.broadcast %cst_58 : f32 to vector<1x512xf32>
      %175 = vector.broadcast %cst_59 : f32 to vector<1x512xf32>
      %176 = arith.select %173, %174, %175 : vector<1x512xi1>, vector<1x512xf32>
      %cst_60 = arith.constant -1.000000e+30 : f32
      %177 = vector.broadcast %cst_60 : f32 to vector<1x512xf32>
      %178 = arith.select %171, %176, %177 : vector<1x512xi1>, vector<1x512xf32>
      %179 = vector.broadcast %158 : vector<1x512xf32> to vector<8x512xf32>
      %180 = vector.broadcast %10 : vector<8x1xf32> to vector<8x512xf32>
      %181 = arith.minimumf %179, %180 : vector<8x512xf32>
      %182 = vector.broadcast %156 : vector<1x512xf32> to vector<8x512xf32>
      %183 = vector.broadcast %8 : vector<8x1xf32> to vector<8x512xf32>
      %184 = arith.maximumf %182, %183 : vector<8x512xf32>
      %185 = arith.subf %181, %184 : vector<8x512xf32>
      %cst_61 = arith.constant 1.000000e+00 : f32
      %186 = vector.broadcast %cst_61 : f32 to vector<8x512xf32>
      %187 = arith.addf %185, %186 : vector<8x512xf32>
      %cst_62 = arith.constant 0.000000e+00 : f32
      %188 = vector.broadcast %cst_62 : f32 to vector<8x512xf32>
      %189 = arith.maximumf %187, %188 : vector<8x512xf32>
      %190 = vector.broadcast %159 : vector<1x512xf32> to vector<8x512xf32>
      %191 = vector.broadcast %11 : vector<8x1xf32> to vector<8x512xf32>
      %192 = arith.minimumf %190, %191 : vector<8x512xf32>
      %193 = vector.broadcast %157 : vector<1x512xf32> to vector<8x512xf32>
      %194 = vector.broadcast %9 : vector<8x1xf32> to vector<8x512xf32>
      %195 = arith.maximumf %193, %194 : vector<8x512xf32>
      %196 = arith.subf %192, %195 : vector<8x512xf32>
      %cst_63 = arith.constant 1.000000e+00 : f32
      %197 = vector.broadcast %cst_63 : f32 to vector<8x512xf32>
      %198 = arith.addf %196, %197 : vector<8x512xf32>
      %cst_64 = arith.constant 0.000000e+00 : f32
      %199 = vector.broadcast %cst_64 : f32 to vector<8x512xf32>
      %200 = arith.maximumf %198, %199 : vector<8x512xf32>
      %201 = arith.mulf %189, %200 : vector<8x512xf32>
      %202 = vector.broadcast %160 : vector<1x512xf32> to vector<8x512xf32>
      %203 = vector.broadcast %18 : vector<8x1xf32> to vector<8x512xf32>
      %204 = arith.addf %202, %203 : vector<8x512xf32>
      %205 = arith.subf %204, %201 : vector<8x512xf32>
      %206 = arith.divf %201, %205 : vector<8x512xf32>
      %cst_65 = arith.constant 0.000000e+00 : f32
      %207 = vector.shape_cast %20 : vector<8x1xi1> to vector<8x1xi1>
      %208 = vector.broadcast %207 : vector<8x1xi1> to vector<8x512xi1>
      %209 = vector.broadcast %cst_65 : f32 to vector<8x512xf32>
      %210 = arith.select %208, %209, %206 : vector<8x512xi1>, vector<8x512xf32>
      %211 = vector.broadcast %178 : vector<1x512xf32> to vector<8x512xf32>
      %212 = arith.minimumf %210, %211 : vector<8x512xf32>
      %cst_66 = arith.constant dense<0xFF800000> : vector<8xf32>
      %213 = vector.multi_reduction <maximumf>, %212, %cst_66 [1] : vector<8x512xf32> to vector<8xf32>
      %214 = vector.shape_cast %213 : vector<8xf32> to vector<8x1xf32>
      %215 = vector.broadcast %214 : vector<8x1xf32> to vector<8x512xf32>
      %216 = arith.cmpf oeq, %212, %215 : vector<8x512xf32>
      %cst_67 = arith.constant 1.000000e+09 : f32
      %217 = vector.shape_cast %22 : vector<1x512xf32> to vector<1x512xf32>
      %218 = vector.broadcast %217 : vector<1x512xf32> to vector<8x512xf32>
      %219 = vector.broadcast %cst_67 : f32 to vector<8x512xf32>
      %220 = arith.select %216, %218, %219 : vector<8x512xi1>, vector<8x512xf32>
      %cst_68 = arith.constant dense<0x7F800000> : vector<8xf32>
      %221 = vector.multi_reduction <minimumf>, %220, %cst_68 [1] : vector<8x512xf32> to vector<8xf32>
      %222 = vector.shape_cast %221 : vector<8xf32> to vector<8x1xf32>
      %c0_69 = arith.constant 0 : index
      %c0_70 = arith.constant 0 : index
      %223 = arith.index_cast %153 : i32 to index
      %224 = vector.load %arg6[%c0_69, %c0_70, %223] : memref<1x1x1536xf32, #tpu.memory_space<vmem>>, vector<1x1x512xf32>
      %225 = vector.shape_cast %224 : vector<1x1x512xf32> to vector<1x512xf32>
      %226 = vector.broadcast %22 : vector<1x512xf32> to vector<8x512xf32>
      %227 = vector.broadcast %222 : vector<8x1xf32> to vector<8x512xf32>
      %228 = arith.cmpf oeq, %226, %227 : vector<8x512xf32>
      %cst_71 = arith.constant 0.000000e+00 : f32
      %229 = vector.shape_cast %225 : vector<1x512xf32> to vector<1x512xf32>
      %230 = vector.broadcast %229 : vector<1x512xf32> to vector<8x512xf32>
      %231 = vector.broadcast %cst_71 : f32 to vector<8x512xf32>
      %232 = arith.select %228, %230, %231 : vector<8x512xi1>, vector<8x512xf32>
      %cst_72 = arith.constant dense<0.000000e+00> : vector<8xf32>
      %233 = vector.multi_reduction <add>, %232, %cst_72 [1] : vector<8x512xf32> to vector<8xf32>
      %234 = vector.shape_cast %233 : vector<8xf32> to vector<8x1xf32>
      %c0_73 = arith.constant 0 : index
      %c0_74 = arith.constant 0 : index
      %235 = vector.load %arg9[%c0_73, %c0_74] : memref<8x1xf32, #tpu.memory_space<vmem>>, vector<8x1xf32>
      %236 = arith.cmpf ogt, %214, %235 : vector<8x1xf32>
      %c0_75 = arith.constant 0 : index
      %c0_76 = arith.constant 0 : index
      %237 = vector.load %arg10[%c0_75, %c0_76] : memref<8x1xf32, #tpu.memory_space<vmem>>, vector<8x1xf32>
      %238 = arith.select %236, %234, %237 : vector<8x1xi1>, vector<8x1xf32>
      %c0_77 = arith.constant 0 : index
      %c0_78 = arith.constant 0 : index
      %239 = vector.load %arg10[%c0_77, %c0_78] : memref<8x1xf32, #tpu.memory_space<vmem>>, vector<8x1xf32>
      tpu.vector_store %arg10[%c0_77, %c0_78], %238 {strides = array<i32>} : memref<8x1xf32, #tpu.memory_space<vmem>>, vector<8x1xf32>,
      %c0_79 = arith.constant 0 : index
      %c0_80 = arith.constant 0 : index
      %240 = vector.load %arg9[%c0_79, %c0_80] : memref<8x1xf32, #tpu.memory_space<vmem>>, vector<8x1xf32>
      %241 = arith.select %236, %214, %240 : vector<8x1xi1>, vector<8x1xf32>
      %c0_81 = arith.constant 0 : index
      %c0_82 = arith.constant 0 : index
      %242 = vector.load %arg9[%c0_81, %c0_82] : memref<8x1xf32, #tpu.memory_space<vmem>>, vector<8x1xf32>
      tpu.vector_store %arg9[%c0_81, %c0_82], %241 {strides = array<i32>} : memref<8x1xf32, #tpu.memory_space<vmem>>, vector<8x1xf32>,
    }
    %c3_i32_11 = arith.constant 3 : i32
    %c0_12 = arith.constant 0 : index
    %c0_13 = arith.constant 0 : index
    %24 = vector.load %arg10[%c0_12, %c0_13] : memref<8x1xf32, #tpu.memory_space<vmem>>, vector<8x1xf32>
    %c0_14 = arith.constant 0 : index
    %c0_15 = arith.constant 0 : index
    %c0_16 = arith.constant 0 : index
    %25 = vector.load %arg7[%c0_14, %c0_15, %c0_16] : memref<1x8x5xf32, #tpu.memory_space<vmem>>, vector<1x8x5xf32>
    %26 = vector.shape_cast %25 : vector<1x8x5xf32> to vector<8x5xf32>
    %cst_17 = arith.constant 1.000000e+00 : f32
    %27 = vector.broadcast %cst_17 : f32 to vector<8x1xf32>
    %cst_18 = arith.constant 1.000000e+00 : f32
    %28 = vector.broadcast %cst_18 : f32 to vector<8x1xf32>
    %29 = vector.extract_strided_slice %26 {offsets = [0, 0], sizes = [8, 1], strides = [1, 1]} : vector<8x5xf32> to vector<8x1xf32>
    %c0_19 = arith.constant 0 : index
    %30 = memref.load %arg1[%c0_19] : memref<5xf32, #tpu.memory_space<smem>>
    %c0_20 = arith.constant 0 : index
    %31 = memref.load %arg2[%c0_20] : memref<5xf32, #tpu.memory_space<smem>>
    %32 = vector.broadcast %30 : f32 to vector<8x1xf32>
    %33 = arith.mulf %29, %32 : vector<8x1xf32>
    %cst_21 = arith.constant 1.000000e+00 : f32
    %34 = vector.broadcast %cst_21 : f32 to vector<8x1xf32>
    %35 = arith.subf %34, %29 : vector<8x1xf32>
    %cst_22 = arith.constant 1.000000e+00 : f32
    %36 = arith.subf %cst_22, %30 : f32
    %37 = vector.broadcast %36 : f32 to vector<8x1xf32>
    %38 = arith.mulf %35, %37 : vector<8x1xf32>
    %39 = arith.addf %33, %38 : vector<8x1xf32>
    %40 = arith.mulf %27, %39 : vector<8x1xf32>
    %cst_23 = arith.constant 1.000000e+00 : f32
    %41 = arith.subf %cst_23, %31 : f32
    %42 = vector.broadcast %41 : f32 to vector<8x1xf32>
    %43 = arith.mulf %29, %42 : vector<8x1xf32>
    %cst_24 = arith.constant 1.000000e+00 : f32
    %44 = vector.broadcast %cst_24 : f32 to vector<8x1xf32>
    %45 = arith.subf %44, %29 : vector<8x1xf32>
    %46 = vector.broadcast %31 : f32 to vector<8x1xf32>
    %47 = arith.mulf %45, %46 : vector<8x1xf32>
    %48 = arith.addf %43, %47 : vector<8x1xf32>
    %49 = arith.mulf %28, %48 : vector<8x1xf32>
    %50 = vector.extract_strided_slice %26 {offsets = [0, 1], sizes = [8, 1], strides = [1, 1]} : vector<8x5xf32> to vector<8x1xf32>
    %c1_25 = arith.constant 1 : index
    %51 = memref.load %arg1[%c1_25] : memref<5xf32, #tpu.memory_space<smem>>
    %c1_26 = arith.constant 1 : index
    %52 = memref.load %arg2[%c1_26] : memref<5xf32, #tpu.memory_space<smem>>
    %53 = vector.broadcast %51 : f32 to vector<8x1xf32>
    %54 = arith.mulf %50, %53 : vector<8x1xf32>
    %cst_27 = arith.constant 1.000000e+00 : f32
    %55 = vector.broadcast %cst_27 : f32 to vector<8x1xf32>
    %56 = arith.subf %55, %50 : vector<8x1xf32>
    %cst_28 = arith.constant 1.000000e+00 : f32
    %57 = arith.subf %cst_28, %51 : f32
    %58 = vector.broadcast %57 : f32 to vector<8x1xf32>
    %59 = arith.mulf %56, %58 : vector<8x1xf32>
    %60 = arith.addf %54, %59 : vector<8x1xf32>
    %61 = arith.mulf %40, %60 : vector<8x1xf32>
    %cst_29 = arith.constant 1.000000e+00 : f32
    %62 = arith.subf %cst_29, %52 : f32
    %63 = vector.broadcast %62 : f32 to vector<8x1xf32>
    %64 = arith.mulf %50, %63 : vector<8x1xf32>
    %cst_30 = arith.constant 1.000000e+00 : f32
    %65 = vector.broadcast %cst_30 : f32 to vector<8x1xf32>
    %66 = arith.subf %65, %50 : vector<8x1xf32>
    %67 = vector.broadcast %52 : f32 to vector<8x1xf32>
    %68 = arith.mulf %66, %67 : vector<8x1xf32>
    %69 = arith.addf %64, %68 : vector<8x1xf32>
    %70 = arith.mulf %49, %69 : vector<8x1xf32>
    %71 = vector.extract_strided_slice %26 {offsets = [0, 2], sizes = [8, 1], strides = [1, 1]} : vector<8x5xf32> to vector<8x1xf32>
    %c2 = arith.constant 2 : index
    %72 = memref.load %arg1[%c2] : memref<5xf32, #tpu.memory_space<smem>>
    %c2_31 = arith.constant 2 : index
    %73 = memref.load %arg2[%c2_31] : memref<5xf32, #tpu.memory_space<smem>>
    %74 = vector.broadcast %72 : f32 to vector<8x1xf32>
    %75 = arith.mulf %71, %74 : vector<8x1xf32>
    %cst_32 = arith.constant 1.000000e+00 : f32
    %76 = vector.broadcast %cst_32 : f32 to vector<8x1xf32>
    %77 = arith.subf %76, %71 : vector<8x1xf32>
    %cst_33 = arith.constant 1.000000e+00 : f32
    %78 = arith.subf %cst_33, %72 : f32
    %79 = vector.broadcast %78 : f32 to vector<8x1xf32>
    %80 = arith.mulf %77, %79 : vector<8x1xf32>
    %81 = arith.addf %75, %80 : vector<8x1xf32>
    %82 = arith.mulf %61, %81 : vector<8x1xf32>
    %cst_34 = arith.constant 1.000000e+00 : f32
    %83 = arith.subf %cst_34, %73 : f32
    %84 = vector.broadcast %83 : f32 to vector<8x1xf32>
    %85 = arith.mulf %71, %84 : vector<8x1xf32>
    %cst_35 = arith.constant 1.000000e+00 : f32
    %86 = vector.broadcast %cst_35 : f32 to vector<8x1xf32>
    %87 = arith.subf %86, %71 : vector<8x1xf32>
    %88 = vector.broadcast %73 : f32 to vector<8x1xf32>
    %89 = arith.mulf %87, %88 : vector<8x1xf32>
    %90 = arith.addf %85, %89 : vector<8x1xf32>
    %91 = arith.mulf %70, %90 : vector<8x1xf32>
    %92 = vector.extract_strided_slice %26 {offsets = [0, 3], sizes = [8, 1], strides = [1, 1]} : vector<8x5xf32> to vector<8x1xf32>
    %c3 = arith.constant 3 : index
    %93 = memref.load %arg1[%c3] : memref<5xf32, #tpu.memory_space<smem>>
    %c3_36 = arith.constant 3 : index
    %94 = memref.load %arg2[%c3_36] : memref<5xf32, #tpu.memory_space<smem>>
    %95 = vector.broadcast %93 : f32 to vector<8x1xf32>
    %96 = arith.mulf %92, %95 : vector<8x1xf32>
    %cst_37 = arith.constant 1.000000e+00 : f32
    %97 = vector.broadcast %cst_37 : f32 to vector<8x1xf32>
    %98 = arith.subf %97, %92 : vector<8x1xf32>
    %cst_38 = arith.constant 1.000000e+00 : f32
    %99 = arith.subf %cst_38, %93 : f32
    %100 = vector.broadcast %99 : f32 to vector<8x1xf32>
    %101 = arith.mulf %98, %100 : vector<8x1xf32>
    %102 = arith.addf %96, %101 : vector<8x1xf32>
    %103 = arith.mulf %82, %102 : vector<8x1xf32>
    %cst_39 = arith.constant 1.000000e+00 : f32
    %104 = arith.subf %cst_39, %94 : f32
    %105 = vector.broadcast %104 : f32 to vector<8x1xf32>
    %106 = arith.mulf %92, %105 : vector<8x1xf32>
    %cst_40 = arith.constant 1.000000e+00 : f32
    %107 = vector.broadcast %cst_40 : f32 to vector<8x1xf32>
    %108 = arith.subf %107, %92 : vector<8x1xf32>
    %109 = vector.broadcast %94 : f32 to vector<8x1xf32>
    %110 = arith.mulf %108, %109 : vector<8x1xf32>
    %111 = arith.addf %106, %110 : vector<8x1xf32>
    %112 = arith.mulf %91, %111 : vector<8x1xf32>
    %113 = vector.extract_strided_slice %26 {offsets = [0, 4], sizes = [8, 1], strides = [1, 1]} : vector<8x5xf32> to vector<8x1xf32>
    %c4 = arith.constant 4 : index
    %114 = memref.load %arg1[%c4] : memref<5xf32, #tpu.memory_space<smem>>
    %c4_41 = arith.constant 4 : index
    %115 = memref.load %arg2[%c4_41] : memref<5xf32, #tpu.memory_space<smem>>
    %116 = vector.broadcast %114 : f32 to vector<8x1xf32>
    %117 = arith.mulf %113, %116 : vector<8x1xf32>
    %cst_42 = arith.constant 1.000000e+00 : f32
    %118 = vector.broadcast %cst_42 : f32 to vector<8x1xf32>
    %119 = arith.subf %118, %113 : vector<8x1xf32>
    %cst_43 = arith.constant 1.000000e+00 : f32
    %120 = arith.subf %cst_43, %114 : f32
    %121 = vector.broadcast %120 : f32 to vector<8x1xf32>
    %122 = arith.mulf %119, %121 : vector<8x1xf32>
    %123 = arith.addf %117, %122 : vector<8x1xf32>
    %124 = arith.mulf %103, %123 : vector<8x1xf32>
    %cst_44 = arith.constant 1.000000e+00 : f32
    %125 = arith.subf %cst_44, %115 : f32
    %126 = vector.broadcast %125 : f32 to vector<8x1xf32>
    %127 = arith.mulf %113, %126 : vector<8x1xf32>
    %cst_45 = arith.constant 1.000000e+00 : f32
    %128 = vector.broadcast %cst_45 : f32 to vector<8x1xf32>
    %129 = arith.subf %128, %113 : vector<8x1xf32>
    %130 = vector.broadcast %115 : f32 to vector<8x1xf32>
    %131 = arith.mulf %129, %130 : vector<8x1xf32>
    %132 = arith.addf %127, %131 : vector<8x1xf32>
    %133 = arith.mulf %112, %132 : vector<8x1xf32>
    %134 = arith.mulf %124, %24 : vector<8x1xf32>
    %135 = arith.mulf %124, %24 : vector<8x1xf32>
    %cst_46 = arith.constant 1.000000e+00 : f32
    %136 = vector.broadcast %cst_46 : f32 to vector<8x1xf32>
    %137 = arith.subf %136, %24 : vector<8x1xf32>
    %138 = arith.mulf %133, %137 : vector<8x1xf32>
    %139 = arith.addf %135, %138 : vector<8x1xf32>
    %140 = arith.divf %134, %139 : vector<8x1xf32>
    %cst_47 = arith.constant 5.000000e-01 : f32
    %141 = vector.broadcast %cst_47 : f32 to vector<8x1xf32>
    %142 = arith.cmpf olt, %140, %141 : vector<8x1xf32>
    %cst_48 = arith.constant 0.000000e+00 : f32
    %143 = vector.shape_cast %142 : vector<8x1xi1> to vector<8x1xi1>
    %144 = vector.broadcast %143 : vector<8x1xi1> to vector<8x5xi1>
    %145 = vector.broadcast %cst_48 : f32 to vector<8x5xf32>
    %146 = arith.select %144, %145, %7 : vector<8x5xi1>, vector<8x5xf32>
    %c0_49 = arith.constant 0 : index
    %c0_50 = arith.constant 0 : index
    %c0_51 = arith.constant 0 : index
    %147 = vector.load %arg8[%c0_49, %c0_50, %c0_51] : memref<1x8x5xf32, #tpu.memory_space<vmem>>, vector<1x8x5xf32>
    %148 = vector.shape_cast %147 : vector<1x8x5xf32> to vector<8x5xf32>
    %149 = vector.shape_cast %146 : vector<8x5xf32> to vector<1x8x5xf32>
    tpu.vector_store %arg8[%c0_49, %c0_50, %c0_51], %149 {strides = array<i32>} : memref<1x8x5xf32, #tpu.memory_space<vmem>>, vector<1x8x5xf32>,
    return
  }
  func.func @transform_0(%arg0: i32) -> i32 {
    %c0_i32 = arith.constant 0 : i32
    %c0_i32_0 = arith.constant 0 : i32
    return %c0_i32 : i32
  }
  func.func @transform_1(%arg0: i32) -> i32 {
    %c0_i32 = arith.constant 0 : i32
    %c0_i32_0 = arith.constant 0 : i32
    return %c0_i32 : i32
  }
  func.func @transform_2(%arg0: i32) -> i32 {
    %c0_i32 = arith.constant 0 : i32
    %c0_i32_0 = arith.constant 0 : i32
    return %c0_i32 : i32
  }
  func.func @transform_3(%arg0: i32) -> (i32, i32) {
    %c0_i32 = arith.constant 0 : i32
    %c0_i32_0 = arith.constant 0 : i32
    %c0_i32_1 = arith.constant 0 : i32
    return %c0_i32, %c0_i32_0 : i32, i32
  }
  func.func @transform_4(%arg0: i32) -> (i32, i32, i32) {
    %c0_i32 = arith.constant 0 : i32
    %c0_i32_0 = arith.constant 0 : i32
    %c0_i32_1 = arith.constant 0 : i32
    return %arg0, %c0_i32, %c0_i32_0 : i32, i32, i32
  }
  func.func @transform_5(%arg0: i32) -> (i32, i32, i32) {
    %c2_i32 = arith.constant 2 : i32
    %0 = arith.muli %c2_i32, %arg0 : i32
    %c1_i32 = arith.constant 1 : i32
    %1 = arith.addi %0, %c1_i32 : i32
    %c0_i32 = arith.constant 0 : i32
    %c0_i32_0 = arith.constant 0 : i32
    %c0_i32_1 = arith.constant 0 : i32
    return %1, %c0_i32, %c0_i32_0 : i32, i32, i32
  }
  func.func @transform_6(%arg0: i32) -> (i32, i32, i32) {
    %c0_i32 = arith.constant 0 : i32
    %c0_i32_0 = arith.constant 0 : i32
    %c0_i32_1 = arith.constant 0 : i32
    return %arg0, %c0_i32, %c0_i32_0 : i32, i32, i32
  }
  func.func @transform_7(%arg0: i32) -> (i32, i32, i32) {
    %c0_i32 = arith.constant 0 : i32
    %c0_i32_0 = arith.constant 0 : i32
    %c0_i32_1 = arith.constant 0 : i32
    return %arg0, %c0_i32, %c0_i32_0 : i32, i32, i32
  }
}

</mosaic_0001>

<llo_original>
// kernel: tpu_custom_call.1
$region0: #{tpu_custom_call.1}
  #allocation0 [shape = 'u32[]', space=smem, size = 0x4, offset = 0x4, fixed_abs, tag = 'smem constant byte address 0x4 - core index']
  #allocation1 [shape = 'u32[72,128]{1,0:T(1,128)}', space=vmem, size = 0x9000, scoped, tag = 'internal scratch']
  #allocation2 [shape = 'f32[8,1]{1,0:T(8,128)}', space=vmem, size = 0x1000, scoped, tag = 'scratch operand']
  #allocation3 [shape = 'f32[8,1]{1,0:T(8,128)}', space=vmem, size = 0x1000, scoped, tag = 'scratch operand']
  %s0 = inlined_call_operand.vmem [shape: f32[5], index: 0, kind: input, shape index: {}]
  %s1 = inlined_call_operand.vmem [shape: f32[5], index: 1, kind: input, shape index: {}]
  %s2 = inlined_call_operand.vmem [shape: f32[2], index: 2, kind: input, shape index: {}]
  %s3 = inlined_call_operand.hbm [shape: f32[8,1536], index: 3, kind: input, shape index: {}]
  %s4 = inlined_call_operand.vmem [shape: f32[2,8,5], index: 4, kind: input, shape index: {}]
  %s5 = inlined_call_operand.hbm [shape: f32[4,1,1536], index: 5, kind: input, shape index: {}]
  %s6 = inlined_call_operand.vmem [shape: f32[2,8,5], index: 6, kind: input, shape index: {}]
  %s7 = inlined_call_operand.vmem [shape: f32[2,8,5], index: 7, kind: output, shape index: {}]
  %s8 = sld [smem:[#allocation0]]
  $region88: #{tpu_custom_call.1} parent=0
    _
  %s10 = ssub.s32 1, %s8
  %s11 = scalar_select 0, %s10, %s8
  $region1: #{tpu_custom_call.1} parent=0
    #allocation4 [shape = 'u8[512]{0}', space=smem, size = 0x200, scoped, tag = 'input window, operand 0, single buffered']
    #allocation5 [shape = 's32[2]{0}', space=sflag, size = 0x8, scoped, tag = 'scoped memory for tpu_custom_call.1']
    #allocation6 [shape = 's32[2]{0}', space=sflag, size = 0x8, scoped, tag = 'scoped memory for tpu_custom_call.1']
    #allocation7 [shape = 'u8[512]{0}', space=smem, size = 0x200, scoped, tag = 'input window, operand 1, single buffered']
    #allocation8 [shape = 's32[1]{0}', space=sflag, size = 0x4, scoped, tag = 'scoped memory for tpu_custom_call.1']
    #allocation9 [shape = 'u8[512]{0}', space=smem, size = 0x200, scoped, tag = 'input window, operand 2, single buffered']
    #allocation10 [shape = 'u8[49152]{0}', space=vmem, size = 0xc000, scoped, tag = 'input window, operand 3, single buffered']
    #allocation11 [shape = 'u8[12288]{0}', space=vmem, size = 0x3000, scoped, tag = 'input window, operand 5']
    #allocation12 [shape = 's32[2]{0}', space=sflag, size = 0x8, scoped, tag = 'scoped memory for tpu_custom_call.1']
    %12 = vsyncpa [#allocation6], 0
    %13 = vsyncpa [#allocation8], 0
    %14 = vsyncpa [#allocation5], 0
    %15 = vsyncpa [#allocation12], 0
    %s16 = scalar_lea.sflag [#allocation12], 1
    %17 = vsyncpa %s16, 0
    loop: start=0, step=1, limit=4
    $region2: #{tpu_custom_call.1} parent=1 // loop_pre_header
      _
    $region3: #{tpu_custom_call.1} parent=1 // loop_header
      %s19 = sphi 0, %s23
      %p20 = scmp.ge.s32.totalorder %s19, 4
      %s27 = sphi 0, %s27
      %s29 = sphi 0, %s27
      %s30 = sphi 0, %s29
      %s44 = sphi 0, %s30
      %s48 = sphi 0, %s48
      %s50 = sphi 0, %s48
      %s51 = sphi 0, %s50
      %s65 = sphi 0, %s51
      %s69 = sphi 0, %s69
      %s71 = sphi 0, %s69
      %s72 = sphi 0, %s71
      %s86 = sphi 0, %s72
      %s90 = sphi 0, %s90
      %s92 = sphi 0, %s90
      %s93 = sphi 0, %s92
      %s107 = sphi 0, %s93
      %s113 = sphi 0, %s115
      %s116 = sphi 0, %s113
      %s117 = sphi 0, %s116
      %s133 = sphi 0, %s117
      %s143 = sphi 0, %s145
      %s146 = sphi 0, %s143
      %s147 = sphi 0, %s146
      %s163 = sphi 0, %s147
      %s169 = sphi 0, %s171
      %s172 = sphi 0, %s169
      %s173 = sphi 0, %s172
      %s189 = sphi 0, %s173
      %s195 = sphi 0, %s197
      %s198 = sphi 0, %s195
      %s199 = sphi 0, %s198
      %s215 = sphi 0, %s199
    $region4: #{tpu_custom_call.1} parent=1 // loop_header_branch
      %22 = sbr.rel (%p20) target = $region8
    $region5: #{tpu_custom_call.1} parent=1 // loop_body
      %s24 = ssub.s32 %s19, 1
      %s25 = ssub.s32 %s19, 2
      %s26 = sadd.s32 %s19, 1
      %s28 = sadd.s32 %s27, 1
      %p31 = scmp.eq.s32.totalorder %s19, 1
      %p32 = scmp.ne.s32.totalorder %s27, %s29
      %p33 = scmp.eq.s32.totalorder %s19, 0
      %p34 = por %p32, %p33
      %p35 = scmp.ne.s32.totalorder %s27, %s29
      %p36 = scmp.eq.s32.totalorder %s24, 1
      %p37 = por %p35, %p36
      %p38 = scmp.ne.s32.totalorder %s29, %s30
      %p39 = scmp.eq.s32.totalorder %s24, 0
      %p40 = por %p38, %p39
      %p41 = scmp.ne.s32.totalorder %s29, %s30
      %p42 = scmp.eq.s32.totalorder %s25, 1
      %p43 = por %p41, %p42
      %p45 = scmp.ne.s32.totalorder %s30, %s44
      %p46 = scmp.eq.s32.totalorder %s25, 0
      %p47 = por %p45, %p46
      %s49 = sadd.s32 %s48, 1
      %p52 = scmp.eq.s32.totalorder %s19, 1
      %p53 = scmp.ne.s32.totalorder %s48, %s50
      %p54 = scmp.eq.s32.totalorder %s19, 0
      %p55 = por %p53, %p54
      %p56 = scmp.ne.s32.totalorder %s48, %s50
      %p57 = scmp.eq.s32.totalorder %s24, 1
      %p58 = por %p56, %p57
      %p59 = scmp.ne.s32.totalorder %s50, %s51
      %p60 = scmp.eq.s32.totalorder %s24, 0
      %p61 = por %p59, %p60
      %p62 = scmp.ne.s32.totalorder %s50, %s51
      %p63 = scmp.eq.s32.totalorder %s25, 1
      %p64 = por %p62, %p63
      %p66 = scmp.ne.s32.totalorder %s51, %s65
      %p67 = scmp.eq.s32.totalorder %s25, 0
      %p68 = por %p66, %p67
      %s70 = sadd.s32 %s69, 1
      %p73 = scmp.eq.s32.totalorder %s19, 1
      %p74 = scmp.ne.s32.totalorder %s69, %s71
      %p75 = scmp.eq.s32.totalorder %s19, 0
      %p76 = por %p74, %p75
      %p77 = scmp.ne.s32.totalorder %s69, %s71
      %p78 = scmp.eq.s32.totalorder %s24, 1
      %p79 = por %p77, %p78
      %p80 = scmp.ne.s32.totalorder %s71, %s72
      %p81 = scmp.eq.s32.totalorder %s24, 0
      %p82 = por %p80, %p81
      %p83 = scmp.ne.s32.totalorder %s71, %s72
      %p84 = scmp.eq.s32.totalorder %s25, 1
      %p85 = por %p83, %p84
      %p87 = scmp.ne.s32.totalorder %s72, %s86
      %p88 = scmp.eq.s32.totalorder %s25, 0
      %p89 = por %p87, %p88
      %s91 = sadd.s32 %s90, 1
      %p94 = scmp.eq.s32.totalorder %s19, 1
      %p95 = scmp.ne.s32.totalorder %s90, %s92
      %p96 = scmp.eq.s32.totalorder %s19, 0
      %p97 = por %p95, %p96
      %p98 = scmp.ne.s32.totalorder %s90, %s92
      %p99 = scmp.eq.s32.totalorder %s24, 1
      %p100 = por %p98, %p99
      %p101 = scmp.ne.s32.totalorder %s92, %s93
      %p102 = scmp.eq.s32.totalorder %s24, 0
      %p103 = por %p101, %p102
      %p104 = scmp.ne.s32.totalorder %s92, %s93
      %p105 = scmp.eq.s32.totalorder %s25, 1
      %p106 = por %p104, %p105
      %p108 = scmp.ne.s32.totalorder %s93, %s107
      %p109 = scmp.eq.s32.totalorder %s25, 0
      %p110 = por %p108, %p109
      %s111 = ssub.s32 %s19, %s26
      %p112 = scmp.eq.s32.totalorder %s111, 0
      %s114 = sadd.s32 %s113, 1
      %s115 = scalar_select %p112, %s113, %s114
      %p118 = pneg %p112
      %p119 = scmp.eq.s32.totalorder %s19, 1
      %p120 = por %p118, %p119
      %p121 = scmp.ne.s32.totalorder %s113, %s116
      %p122 = scmp.eq.s32.totalorder %s19, 0
      %p123 = por %p121, %p122
      %p124 = scmp.ne.s32.totalorder %s113, %s116
      %p125 = scmp.eq.s32.totalorder %s24, 1
      %p126 = por %p124, %p125
      %p127 = scmp.ne.s32.totalorder %s116, %s117
      %p128 = scmp.eq.s32.totalorder %s24, 0
      %p129 = por %p127, %p128
      %p130 = scmp.ne.s32.totalorder %s116, %s117
      %p131 = scmp.eq.s32.totalorder %s25, 1
      %p132 = por %p130, %p131
      %p134 = scmp.ne.s32.totalorder %s117, %s133
      %p135 = scmp.eq.s32.totalorder %s25, 0
      %p136 = por %p134, %p135
      %s137 = smul.u32 %s19, 2
      %s138 = sadd.s32 %s137, 1
      %s139 = smul.u32 %s26, 2
      %s140 = sadd.s32 %s139, 1
      %s141 = ssub.s32 %s138, %s140
      %p142 = scmp.eq.s32.totalorder %s141, 0
      %s144 = sadd.s32 %s143, 1
      %s145 = scalar_select %p142, %s143, %s144
      %p148 = pneg %p142
      %p149 = scmp.eq.s32.totalorder %s19, 1
      %p150 = por %p148, %p149
      %p151 = scmp.ne.s32.totalorder %s143, %s146
      %p152 = scmp.eq.s32.totalorder %s19, 0
      %p153 = por %p151, %p152
      %p154 = scmp.ne.s32.totalorder %s143, %s146
      %p155 = scmp.eq.s32.totalorder %s24, 1
      %p156 = por %p154, %p155
      %p157 = scmp.ne.s32.totalorder %s146, %s147
      %p158 = scmp.eq.s32.totalorder %s24, 0
      %p159 = por %p157, %p158
      %p160 = scmp.ne.s32.totalorder %s146, %s147
      %p161 = scmp.eq.s32.totalorder %s25, 1
      %p162 = por %p160, %p161
      %p164 = scmp.ne.s32.totalorder %s147, %s163
      %p165 = scmp.eq.s32.totalorder %s25, 0
      %p166 = por %p164, %p165
      %s167 = ssub.s32 %s19, %s26
      %p168 = scmp.eq.s32.totalorder %s167, 0
      %s170 = sadd.s32 %s169, 1
      %s171 = scalar_select %p168, %s169, %s170
      %p174 = pneg %p168
      %p175 = scmp.eq.s32.totalorder %s19, 1
      %p176 = por %p174, %p175
      %p177 = scmp.ne.s32.totalorder %s169, %s172
      %p178 = scmp.eq.s32.totalorder %s19, 0
      %p179 = por %p177, %p178
      %p180 = scmp.ne.s32.totalorder %s169, %s172
      %p181 = scmp.eq.s32.totalorder %s24, 1
      %p182 = por %p180, %p181
      %p183 = scmp.ne.s32.totalorder %s172, %s173
      %p184 = scmp.eq.s32.totalorder %s24, 0
      %p185 = por %p183, %p184
      %p186 = scmp.ne.s32.totalorder %s172, %s173
      %p187 = scmp.eq.s32.totalorder %s25, 1
      %p188 = por %p186, %p187
      %p190 = scmp.ne.s32.totalorder %s173, %s189
      %p191 = scmp.eq.s32.totalorder %s25, 0
      %p192 = por %p190, %p191
      %s193 = ssub.s32 %s19, %s26
      %p194 = scmp.eq.s32.totalorder %s193, 0
      %s196 = sadd.s32 %s195, 1
      %s197 = scalar_select %p194, %s195, %s196
      %p200 = pneg %p194
      %p201 = scmp.eq.s32.totalorder %s19, 1
      %p202 = por %p200, %p201
      %p203 = scmp.ne.s32.totalorder %s195, %s198
      %p204 = scmp.eq.s32.totalorder %s19, 0
      %p205 = por %p203, %p204
      %p206 = scmp.ne.s32.totalorder %s195, %s198
      %p207 = scmp.eq.s32.totalorder %s24, 1
      %p208 = por %p206, %p207
      %p209 = scmp.ne.s32.totalorder %s198, %s199
      %p210 = scmp.eq.s32.totalorder %s24, 0
      %p211 = por %p209, %p210
      %p212 = scmp.ne.s32.totalorder %s198, %s199
      %p213 = scmp.eq.s32.totalorder %s25, 1
      %p214 = por %p212, %p213
      %p216 = scmp.ne.s32.totalorder %s199, %s215
      %p217 = scmp.eq.s32.totalorder %s25, 0
      %p218 = por %p216, %p217
      %p219 = scmp.le.s32.totalorder 1, %s19
      %p220 = scmp.lt.s32.totalorder %s19, 3
      %p221 = pnand %p219, %p220
      %p222 = pneg %p221
      // Predicated region
      $region9: #{tpu_custom_call.1} parent=5 // pred_check
        _
      $region10: #{tpu_custom_call.1} parent=5 // pred_check_branch
        %224 = sbr.rel (%p221) target = $region12
      $region11: #{tpu_custom_call.1} parent=5 // pred_region
        %s225 = ssub.s32 %s19, 1
        // Predicated region
        $region13: #{tpu_custom_call.1} parent=11 // pred_check
          %p226 = pneg %p40
        $region14: #{tpu_custom_call.1} parent=11 // pred_check_branch
          %228 = sbr.rel (%p226) target = $region16
        $region15: #{tpu_custom_call.1} parent=11 // pred_region
          %230 = vsyncadd [#allocation6], 0
          %s232 = sshll.u32 %s0, 4
          %s233 = int_to_ptr.vmem [resolvable:$true] %s232
          %235 = dma.vmem_to_smem %s233, 16, [#allocation4], [#allocation6]
        $region16: #{tpu_custom_call.1} parent=11 // pred_fallthru
          _
        // Predicated region
        $region17: #{tpu_custom_call.1} parent=11 // pred_check
          %p236 = pneg %p61
        $region18: #{tpu_custom_call.1} parent=11 // pred_check_branch
          %238 = sbr.rel (%p236) target = $region20
        $region19: #{tpu_custom_call.1} parent=11 // pred_region
          %240 = vsyncadd [#allocation8], 0
          %s242 = sshll.u32 %s1, 4
          %s243 = int_to_ptr.vmem [resolvable:$true] %s242
          %245 = dma.vmem_to_smem %s243, 16, [#allocation7], [#allocation8]
        $region20: #{tpu_custom_call.1} parent=11 // pred_fallthru
          _
        // Predicated region
        $region21: #{tpu_custom_call.1} parent=11 // pred_check
          %p246 = pneg %p82
        $region22: #{tpu_custom_call.1} parent=11 // pred_check_branch
          %248 = sbr.rel (%p246) target = $region24
        $region23: #{tpu_custom_call.1} parent=11 // pred_region
          %250 = vsyncadd [#allocation8], 0
          %s252 = sshll.u32 %s2, 4
          %s253 = int_to_ptr.vmem [resolvable:$true] %s252
          %255 = dma.vmem_to_smem %s253, 16, [#allocation9], [#allocation8]
        $region24: #{tpu_custom_call.1} parent=11 // pred_fallthru
          _
        // Predicated region
        $region25: #{tpu_custom_call.1} parent=11 // pred_check
          %p256 = pneg %p103
        $region26: #{tpu_custom_call.1} parent=11 // pred_check_branch
          %258 = sbr.rel (%p256) target = $region28
        $region27: #{tpu_custom_call.1} parent=11 // pred_region
          %260 = vsyncadd [#allocation5], 0
          %s262 = sshll.u32 %s3, 4
          %s263 = int_to_ptr.hbm [resolvable:$true] %s262
          %s264 = sshll.u32 [#allocation10], 4
          %s265 = int_to_ptr.vmem [resolvable:$true] %s264
          %267 = dma.hbm_to_vmem [thread:$0]  %s263, 1536, %s265, [#allocation5]
        $region28: #{tpu_custom_call.1} parent=11 // pred_fallthru
          _
      $region12: #{tpu_custom_call.1} parent=5 // pred_fallthru
        _
      %p268 = scmp.lt.s32.totalorder %s19, 2
      // Predicated region
      $region29: #{tpu_custom_call.1} parent=5 // pred_check
        %p269 = pneg %p268
      $region30: #{tpu_custom_call.1} parent=5 // pred_check_branch
        %271 = sbr.rel (%p269) target = $region32
      $region31: #{tpu_custom_call.1} parent=5 // pred_region
        // Predicated region
        $region33: #{tpu_custom_call.1} parent=31 // pred_check
          %p272 = pneg %p123
        $region34: #{tpu_custom_call.1} parent=31 // pred_check_branch
          %274 = sbr.rel (%p272) target = $region36
        $region35: #{tpu_custom_call.1} parent=31 // pred_region
          %p275 = scmp.lt.s32.totalorder %s19, 1
          %s276 = scalar_select %p275, %s19, 1
          %s277 = smul.addr %s276, 8
          %s278 = scalar_lea.vmem %s4, %s277
        $region36: #{tpu_custom_call.1} parent=31 // pred_fallthru
          _
        // Predicated region
        $region37: #{tpu_custom_call.1} parent=31 // pred_check
          %p279 = pneg %p153
        $region38: #{tpu_custom_call.1} parent=31 // pred_check_branch
          %281 = sbr.rel (%p279) target = $region40
        $region39: #{tpu_custom_call.1} parent=31 // pred_region
          %s282 = sand.u32 %s143, 1
          %s283 = scalar_lea.sflag [#allocation12], %s282
          %s284 = sand.u32 %s143, 1
          %s285 = smul.addr %s284, 12
          %s286 = scalar_lea.vmem [#allocation11], %s285
          %s287 = smul.u32 %s19, 2
          %s288 = sadd.s32 %s287, 1
          %290 = vsyncadd %s283, 0
          %s291 = smul.addr %s288, 12
          %s292 = scalar_lea.hbm %s5, %s291
          %s294 = sshll.u32 %s292, 4
          %s295 = int_to_ptr.hbm [resolvable:$true] %s294
          %s296 = sshll.u32 %s286, 4
          %s297 = int_to_ptr.vmem [resolvable:$true] %s296
          %299 = dma.hbm_to_vmem [thread:$0]  %s295, 192, %s297, %s283
        $region40: #{tpu_custom_call.1} parent=31 // pred_fallthru
          _
        // Predicated region
        $region41: #{tpu_custom_call.1} parent=31 // pred_check
          %p300 = pneg %p179
        $region42: #{tpu_custom_call.1} parent=31 // pred_check_branch
          %302 = sbr.rel (%p300) target = $region44
        $region43: #{tpu_custom_call.1} parent=31 // pred_region
          %p303 = scmp.lt.s32.totalorder %s19, 1
          %s304 = scalar_select %p303, %s19, 1
          %s305 = smul.addr %s304, 8
          %s306 = scalar_lea.vmem %s6, %s305
        $region44: #{tpu_custom_call.1} parent=31 // pred_fallthru
          _
      $region32: #{tpu_custom_call.1} parent=5 // pred_fallthru
        _
      %p307 = scmp.le.s32.totalorder 1, %s19
      %p308 = scmp.lt.s32.totalorder %s19, 3
      %p309 = pnand %p307, %p308
      %p310 = pneg %p309
      // Predicated region
      $region45: #{tpu_custom_call.1} parent=5 // pred_check
        _
      $region46: #{tpu_custom_call.1} parent=5 // pred_check_branch
        %312 = sbr.rel (%p309) target = $region48
      $region47: #{tpu_custom_call.1} parent=5 // pred_region
        %s313 = ssub.s32 %s19, 1
        // Predicated region
        $region49: #{tpu_custom_call.1} parent=47 // pred_check
          %p314 = pneg %p40
        $region50: #{tpu_custom_call.1} parent=47 // pred_check_branch
          %316 = sbr.rel (%p314) target = $region52
        $region51: #{tpu_custom_call.1} parent=47 // pred_region
          %318 = dma.done [#allocation6], 16
        $region52: #{tpu_custom_call.1} parent=47 // pred_fallthru
          _
        // Predicated region
        $region53: #{tpu_custom_call.1} parent=47 // pred_check
          %p319 = pneg %p61
        $region54: #{tpu_custom_call.1} parent=47 // pred_check_branch
          %321 = sbr.rel (%p319) target = $region56
        $region55: #{tpu_custom_call.1} parent=47 // pred_region
          %323 = dma.done [#allocation8], 16
        $region56: #{tpu_custom_call.1} parent=47 // pred_fallthru
          _
        // Predicated region
        $region57: #{tpu_custom_call.1} parent=47 // pred_check
          %p324 = pneg %p82
        $region58: #{tpu_custom_call.1} parent=47 // pred_check_branch
          %326 = sbr.rel (%p324) target = $region60
        $region59: #{tpu_custom_call.1} parent=47 // pred_region
          %328 = dma.done [#allocation8], 16
        $region60: #{tpu_custom_call.1} parent=47 // pred_fallthru
          _
        // Predicated region
        $region61: #{tpu_custom_call.1} parent=47 // pred_check
          %p329 = pneg %p103
        $region62: #{tpu_custom_call.1} parent=47 // pred_check_branch
          %331 = sbr.rel (%p329) target = $region64
        $region63: #{tpu_custom_call.1} parent=47 // pred_region
          %333 = dma.done [#allocation5], 1536
        $region64: #{tpu_custom_call.1} parent=47 // pred_fallthru
          _
        %s334 = sand.u32 %s146, 1
        %s335 = scalar_lea.sflag [#allocation12], %s334
        %s336 = sand.u32 %s146, 1
        %s337 = smul.addr %s336, 12
        %s338 = scalar_lea.vmem [#allocation11], %s337
        // Predicated region
        $region65: #{tpu_custom_call.1} parent=47 // pred_check
          %p339 = pneg %p159
        $region66: #{tpu_custom_call.1} parent=47 // pred_check_branch
          %341 = sbr.rel (%p339) target = $region68
        $region67: #{tpu_custom_call.1} parent=47 // pred_region
          %343 = dma.done %s335, 192
        $region68: #{tpu_custom_call.1} parent=47 // pred_fallthru
          _
        %344 = sfence
        %p345 = pneg %p40
        %p346 = pneg %p37
        %p347 = pneg %p61
        %p348 = pneg %p58
        %p349 = pneg %p82
        %p350 = pneg %p79
        %p351 = pneg %p103
        %p352 = pneg %p100
        %p353 = scmp.lt.s32.totalorder %s24, 1
        %s354 = scalar_select %p353, %s24, 1
        %s355 = smul.addr %s354, 8
        %s356 = scalar_lea.vmem %s4, %s355
        %p357 = pneg %p129
        %p358 = pneg %p126
        %s359 = sand.u32 %s146, 1
        %s360 = scalar_lea.sflag [#allocation12], %s359
        %s361 = sand.u32 %s146, 1
        %s362 = smul.addr %s361, 12
        %s363 = scalar_lea.vmem [#allocation11], %s362
        %p364 = pneg %p159
        %p365 = pneg %p156
        %p366 = scmp.lt.s32.totalorder %s24, 1
        %s367 = scalar_select %p366, %s24, 1
        %s368 = smul.addr %s367, 8
        %s369 = scalar_lea.vmem %s6, %s368
        %p370 = pneg %p185
        %p371 = pneg %p182
        %p372 = pneg %p211
        %p373 = pneg %p208
        %p374 = scmp.lt.s32.totalorder %s24, 1
        %s375 = scalar_select %p374, %s24, 1
        %s376 = smul.addr %s375, 8
        %s377 = scalar_lea.vmem %s7, %s376
        %p378 = scmp.lt.s32.totalorder %s24, 1
        %s379 = scalar_select %p378, %s24, 1
        %s380 = smul.addr %s379, 8
        %s381 = scalar_lea.vmem %s4, %s380
        %s382 = smul.u32 %s24, 2
        %s383 = sadd.s32 %s382, 1
        %p384 = scmp.lt.s32.totalorder %s24, 1
        %s385 = scalar_select %p384, %s24, 1
        %s386 = smul.addr %s385, 8
        %s387 = scalar_lea.vmem %s6, %s386
        %p388 = scmp.lt.s32.totalorder %s24, 1
        %s389 = scalar_select %p388, %s24, 1
        %s390 = smul.addr %s389, 8
        %s391 = scalar_lea.vmem %s7, %s390
        %vm392 = vcmask 7168
        %393 = vst.msk [vmem:[#allocation2] sm:$0xff] %vm392, -inf
        %394 = vst.msk [vmem:[#allocation3] sm:$0xff] %vm392, 0.0
        %s395 = sld [smem:[#allocation9]]
        %s396 = sld [smem:[#allocation9 + $0x1]]
        %v397 = vld [vmem:[%s381] sm:$0xff]
        %399 = vrot.lane.b32.xlu0 %v397, 2
        %v400 = vpop.permute.xlu0 %399
        %v402 = vsub.f32 %v397, %v400
        %v403 = vadd.f32 %v402, 1.0
        %405 = vrot.lane.b32.xlu0 %v403, 127
        %v406 = vpop.permute.xlu0 %405
        %v408 = vmul.f32 %v403, %v406
        %vm409 = vcmp.eq.f32.partialorder %v408, 1.0
        %v410 = vlaneseq
        %v411 = vand.u32 %v410, 127
        %v412 = vadd.s32 %v411, 128
        %v413 = vadd.s32 %v411, 256
        %v414 = vadd.s32 %v411, 384
        %v415 = vcvt.s32.f32 %v411
        %v416 = vcvt.s32.f32 %v412
        %v417 = vcvt.s32.f32 %v413
        %v418 = vcvt.s32.f32 %v414
        loop: start=0, step=1, limit=3
        $region69: #{tpu_custom_call.1} parent=47 // loop_pre_header
          _
        $region70: #{tpu_custom_call.1} parent=47 // loop_header
          %s420 = sphi 0, %s424
          %p421 = scmp.ge.s32.totalorder %s420, 3
        $region71: #{tpu_custom_call.1} parent=47 // loop_header_branch
          %423 = sbr.rel (%p421) target = $region75
        $region72: #{tpu_custom_call.1} parent=47 // loop_body
          %s425 = smul.u32 %s420, 512
          %s426 = sshra.s32 %s425, 7
          %s427 = sand.u32 %s425, 127
          %s428 = smul.addr %s426, 8
          %s429 = scalar_lea.vmem [#allocation10], %s428
          %v430 = vld [vmem:[%s429] sm:$0xff]
          %v431 = vld [vmem:[%s429 + $0x8] sm:$0xff]
          %v432 = vld [vmem:[%s429 + $0x10] sm:$0xff]
          %v433 = vld [vmem:[%s429 + $0x18] sm:$0xff]
          %vm434 = vcmp.ge.f32.partialorder %v430, 0.0
          %vm435 = vcmp.ge.f32.partialorder %v431, 0.0
          %vm436 = vcmp.ge.f32.partialorder %v432, 0.0
          %vm437 = vcmp.ge.f32.partialorder %v433, 0.0
          %v438 = vsel %vm434, 1, 0
          %v439 = vsel %vm435, 1, 0
          %v440 = vsel %vm436, 1, 0
          %v441 = vsel %vm437, 1, 0
          %v442 = vrot.slane %v438, 1
          %v443 = vrot.slane %v439, 1
          %v444 = vrot.slane %v440, 1
          %v445 = vrot.slane %v441, 1
          %vm446 = vcmp.ne.s32.totalorder %v442, 0
          %vm447 = vcmp.ne.s32.totalorder %v443, 0
          %vm448 = vcmp.ne.s32.totalorder %v444, 0
          %vm449 = vcmp.ne.s32.totalorder %v445, 0
          %vm450 = vmand %vm434, %vm446
          %vm451 = vmand %vm435, %vm447
          %vm452 = vmand %vm436, %vm448
          %vm453 = vmand %vm437, %vm449
          %v454 = vstv %s396
          %vm455 = vcmp.lt.f32.partialorder %v430, %v454
          %vm456 = vcmp.lt.f32.partialorder %v431, %v454
          %vm457 = vcmp.lt.f32.partialorder %v432, %v454
          %vm458 = vcmp.lt.f32.partialorder %v433, %v454
          %v459 = vsel %vm455, 1, 0
          %v460 = vsel %vm456, 1, 0
          %v461 = vsel %vm457, 1, 0
          %v462 = vsel %vm458, 1, 0
          %v463 = vrot.slane %v459, 2
          %v464 = vrot.slane %v460, 2
          %v465 = vrot.slane %v461, 2
          %v466 = vrot.slane %v462, 2
          %vm467 = vcmp.ne.s32.totalorder %v463, 0
          %vm468 = vcmp.ne.s32.totalorder %v464, 0
          %vm469 = vcmp.ne.s32.totalorder %v465, 0
          %vm470 = vcmp.ne.s32.totalorder %v466, 0
          %vm471 = vmand %vm450, %vm467
          %vm472 = vmand %vm451, %vm468
          %vm473 = vmand %vm452, %vm469
          %vm474 = vmand %vm453, %vm470
          %v475 = vstv %s395
          %vm476 = vcmp.lt.f32.partialorder %v430, %v475
          %vm477 = vcmp.lt.f32.partialorder %v431, %v475
          %vm478 = vcmp.lt.f32.partialorder %v432, %v475
          %vm479 = vcmp.lt.f32.partialorder %v433, %v475
          %v480 = vsel %vm476, 1, 0
          %v481 = vsel %vm477, 1, 0
          %v482 = vsel %vm478, 1, 0
          %v483 = vsel %vm479, 1, 0
          %v484 = vrot.slane %v480, 3
          %v485 = vrot.slane %v481, 3
          %v486 = vrot.slane %v482, 3
          %v487 = vrot.slane %v483, 3
          %vm488 = vcmp.ne.s32.totalorder %v484, 0
          %vm489 = vcmp.ne.s32.totalorder %v485, 0
          %vm490 = vcmp.ne.s32.totalorder %v486, 0
          %vm491 = vcmp.ne.s32.totalorder %v487, 0
          %vm492 = vmand %vm471, %vm488
          %vm493 = vmand %vm472, %vm489
          %vm494 = vmand %vm473, %vm490
          %vm495 = vmand %vm474, %vm491
          %vm496 = vcmp.eq.f32.partialorder %v430, 1.0
          %vm497 = vcmp.eq.f32.partialorder %v431, 1.0
          %vm498 = vcmp.eq.f32.partialorder %v432, 1.0
          %vm499 = vcmp.eq.f32.partialorder %v433, 1.0
          %v500 = vsel %vm496, -1.0, 1e+30
          %v501 = vsel %vm497, -1.0, 1e+30
          %v502 = vsel %vm498, -1.0, 1e+30
          %v503 = vsel %vm499, -1.0, 1e+30
          %v508 = vrot.slane %v500, 4
          %v509 = vrot.slane %v501, 4
          %v510 = vrot.slane %v502, 4
          %v511 = vrot.slane %v503, 4
          %v516 = vsel %vm492, %v508, -1e+30
          %v517 = vsel %vm493, %v509, -1e+30
          %v518 = vsel %vm494, %v510, -1e+30
          %v519 = vsel %vm495, %v511, -1e+30
          %v520 = vperm.slane %v430, 2
          %v521 = vperm.slane %v431, 2
          %v522 = vperm.slane %v432, 2
          %v523 = vperm.slane %v433, 2
          %524 = vset.pattern.permute.xlu0 2
          %525 = vperm.xlu0 %524, %v397
          %v526 = vpop.permute.xlu0 %525
          %v528 = vmin.f32 %v520, %v526
          %v529 = vmin.f32 %v521, %v526
          %v530 = vmin.f32 %v522, %v526
          %v531 = vmin.f32 %v523, %v526
          %v532 = vperm.slane %v430, 0
          %v533 = vperm.slane %v431, 0
          %v534 = vperm.slane %v432, 0
          %v535 = vperm.slane %v433, 0
          %536 = vset.pattern.permute.xlu0 0
          %537 = vperm.xlu0 %536, %v397
          %v538 = vpop.permute.xlu0 %537
          %v540 = vmax.f32 %v532, %v538
          %v541 = vmax.f32 %v533, %v538
          %v542 = vmax.f32 %v534, %v538
          %v543 = vmax.f32 %v535, %v538
          %v544 = vsub.f32 %v528, %v540
          %v545 = vsub.f32 %v529, %v541
          %v546 = vsub.f32 %v530, %v542
          %v547 = vsub.f32 %v531, %v543
          %v548 = vadd.f32 %v544, 1.0
          %v549 = vadd.f32 %v545, 1.0
          %v550 = vadd.f32 %v546, 1.0
          %v551 = vadd.f32 %v547, 1.0
          %v552 = vmax.f32 %v548, 0.0
          %v553 = vmax.f32 %v549, 0.0
          %v554 = vmax.f32 %v550, 0.0
          %v555 = vmax.f32 %v551, 0.0
          %v556 = vperm.slane %v430, 3
          %v557 = vperm.slane %v431, 3
          %v558 = vperm.slane %v432, 3
          %v559 = vperm.slane %v433, 3
          %560 = vset.pattern.permute.xlu0 3
          %561 = vperm.xlu0 %560, %v397
          %v562 = vpop.permute.xlu0 %561
          %v564 = vmin.f32 %v556, %v562
          %v565 = vmin.f32 %v557, %v562
          %v566 = vmin.f32 %v558, %v562
          %v567 = vmin.f32 %v559, %v562
          %v568 = vperm.slane %v430, 1
          %v569 = vperm.slane %v431, 1
          %v570 = vperm.slane %v432, 1
          %v571 = vperm.slane %v433, 1
          %572 = vset.pattern.permute.xlu0 1
          %573 = vperm.xlu0 %572, %v397
          %v574 = vpop.permute.xlu0 %573
          %v576 = vmax.f32 %v568, %v574
          %v577 = vmax.f32 %v569, %v574
          %v578 = vmax.f32 %v570, %v574
          %v579 = vmax.f32 %v571, %v574
          %v580 = vsub.f32 %v564, %v576
          %v581 = vsub.f32 %v565, %v577
          %v582 = vsub.f32 %v566, %v578
          %v583 = vsub.f32 %v567, %v579
          %v584 = vadd.f32 %v580, 1.0
          %v585 = vadd.f32 %v581, 1.0
          %v586 = vadd.f32 %v582, 1.0
          %v587 = vadd.f32 %v583, 1.0
          %v588 = vmax.f32 %v584, 0.0
          %v589 = vmax.f32 %v585, 0.0
          %v590 = vmax.f32 %v586, 0.0
          %v591 = vmax.f32 %v587, 0.0
          %v592 = vmul.f32 %v552, %v588
          %v593 = vmul.f32 %v553, %v589
          %v594 = vmul.f32 %v554, %v590
          %v595 = vmul.f32 %v555, %v591
          %v596 = vperm.slane %v430, 4
          %v597 = vperm.slane %v431, 4
          %v598 = vperm.slane %v432, 4
          %v599 = vperm.slane %v433, 4
          %601 = vset.pattern.permute.xlu0 2
          %602 = vperm.xlu0 %601, %v408
          %v603 = vpop.permute.xlu0 %602
          %v605 = vadd.f32 %v596, %v603
          %v606 = vadd.f32 %v597, %v603
          %v607 = vadd.f32 %v598, %v603
          %v608 = vadd.f32 %v599, %v603
          %v609 = vsub.f32 %v605, %v592
          %v610 = vsub.f32 %v606, %v593
          %v611 = vsub.f32 %v607, %v594
          %v612 = vsub.f32 %v608, %v595
          %v613 = vrcp.pop %v609
          %v614 = vmul.f32 %v609, %v613
          %v615 = vsub.f32 1.0, %v614
          %v616 = vmul.f32 %v613, %v615
          %v617 = vadd.f32 %v613, %v616
          %vm618 = vweird.f32 %v609
          %vm619 = vweird.f32 %v613
          %vm620 = vmor %vm618, %vm619
          %v621 = vsel %vm620, %v613, %v617
          %v622 = vand.u32 2147483647, %v609
          %vm623 = vcmp.eq.f32.partialorder %v622, 8.507059e+37
          %v624 = vand.u32 %v609, 2147483648
          %v625 = vor.u32 1.1754944e-38, %v624
          %v626 = vsel %vm623, %v625, %v621
          %v627 = vmul.f32 %v592, %v626
          %v628 = vrcp.pop %v610
          %v629 = vmul.f32 %v610, %v628
          %v630 = vsub.f32 1.0, %v629
          %v631 = vmul.f32 %v628, %v630
          %v632 = vadd.f32 %v628, %v631
          %vm633 = vweird.f32 %v610
          %vm634 = vweird.f32 %v628
          %vm635 = vmor %vm633, %vm634
          %v636 = vsel %vm635, %v628, %v632
          %v637 = vand.u32 2147483647, %v610
          %vm638 = vcmp.eq.f32.partialorder %v637, 8.507059e+37
          %v639 = vand.u32 %v610, 2147483648
          %v640 = vor.u32 1.1754944e-38, %v639
          %v641 = vsel %vm638, %v640, %v636
          %v642 = vmul.f32 %v593, %v641
          %v643 = vrcp.pop %v611
          %v644 = vmul.f32 %v611, %v643
          %v645 = vsub.f32 1.0, %v644
          %v646 = vmul.f32 %v643, %v645
          %v647 = vadd.f32 %v643, %v646
          %vm648 = vweird.f32 %v611
          %vm649 = vweird.f32 %v643
          %vm650 = vmor %vm648, %vm649
          %v651 = vsel %vm650, %v643, %v647
          %v652 = vand.u32 2147483647, %v611
          %vm653 = vcmp.eq.f32.partialorder %v652, 8.507059e+37
          %v654 = vand.u32 %v611, 2147483648
          %v655 = vor.u32 1.1754944e-38, %v654
          %v656 = vsel %vm653, %v655, %v651
          %v657 = vmul.f32 %v594, %v656
          %v658 = vrcp.pop %v612
          %v659 = vmul.f32 %v612, %v658
          %v660 = vsub.f32 1.0, %v659
          %v661 = vmul.f32 %v658, %v660
          %v662 = vadd.f32 %v658, %v661
          %vm663 = vweird.f32 %v612
          %vm664 = vweird.f32 %v658
          %vm665 = vmor %vm663, %vm664
          %v666 = vsel %vm665, %v658, %v662
          %v667 = vand.u32 2147483647, %v612
          %vm668 = vcmp.eq.f32.partialorder %v667, 8.507059e+37
          %v669 = vand.u32 %v612, 2147483648
          %v670 = vor.u32 1.1754944e-38, %v669
          %v671 = vsel %vm668, %v670, %v666
          %v672 = vmul.f32 %v595, %v671
          %v673 = vsel %vm409, 1, 0
          %674 = vset.pattern.permute.xlu0 2
          %675 = vperm.xlu0 %674, %v673
          %v676 = vpop.permute.xlu0 %675
          %vm677 = vcmp.eq.s32.totalorder %v676, 1
          %v678 = vsel %vm677, 0.0, %v627
          %v679 = vsel %vm677, 0.0, %v642
          %v680 = vsel %vm677, 0.0, %v657
          %v681 = vsel %vm677, 0.0, %v672
          %v682 = vperm.slane %v516, 0
          %v683 = vperm.slane %v517, 0
          %v684 = vperm.slane %v518, 0
          %v685 = vperm.slane %v519, 0
          %v686 = vmin.f32 %v678, %v682
          %v687 = vmin.f32 %v679, %v683
          %v688 = vmin.f32 %v680, %v684
          %v689 = vmin.f32 %v681, %v685
          %v690 = vmax.f32 %v686, %v687
          %v691 = vmax.f32 %v688, %v689
          %v692 = vmax.f32 %v690, %v691
          %693 = vmax.xlane.f32.xlu0 %v692
          %v694 = vpop.xlane.xlu0 %693
          %vm695 = vcmp.eq.f32.partialorder %v686, %v694
          %vm696 = vcmp.eq.f32.partialorder %v687, %v694
          %vm697 = vcmp.eq.f32.partialorder %v688, %v694
          %vm698 = vcmp.eq.f32.partialorder %v689, %v694
          %v699 = vsel %vm695, %v415, 1e+09
          %v700 = vsel %vm696, %v416, 1e+09
          %v701 = vsel %vm697, %v417, 1e+09
          %v702 = vsel %vm698, %v418, 1e+09
          %v703 = vmin.f32 %v699, %v700
          %v704 = vmin.f32 %v701, %v702
          %v705 = vmin.f32 %v703, %v704
          %706 = vmin.xlane.f32.xlu0 %v705
          %v707 = vpop.xlane.xlu0 %706
          %s708 = scalar_lea.vmem %s338, %s426 [#allocation11]
          %v709 = vld [vmem:[%s708] sm:$0xf]
          %vm710 = vcmp.eq.f32.partialorder %v415, %v707
          %vm711 = vcmp.eq.f32.partialorder %v416, %v707
          %vm712 = vcmp.eq.f32.partialorder %v417, %v707
          %vm713 = vcmp.eq.f32.partialorder %v418, %v707
          %v715 = vperm.slane %v709, 0
          %v716 = vperm.slane %v709, 1
          %v717 = vperm.slane %v709, 2
          %v718 = vperm.slane %v709, 3
          %v723 = vsel %vm710, %v715, 0.0
          %v724 = vsel %vm711, %v716, 0.0
          %v725 = vsel %vm712, %v717, 0.0
          %v726 = vsel %vm713, %v718, 0.0
          %v727 = vadd.f32 %v723, %v724
          %v728 = vadd.f32 %v727, %v725
          %v729 = vadd.f32 %v728, %v726
          %730 = vadd.xlane.f32.xlu0 %v729
          %v731 = vpop.xlane.xlu0 %730
          %v732 = vld [vmem:[#allocation2] sm:$0xff]
          %vm733 = vcmp.gt.f32.partialorder %v694, %v732
          %v734 = vld [vmem:[#allocation3] sm:$0xff]
          %v735 = vsel %vm733, %v731, %v734
          %736 = vst.msk [vmem:[#allocation3] sm:$0xff] %vm392, %v735
          %v737 = vld [vmem:[#allocation2] sm:$0xff]
          %v738 = vsel %vm733, %v694, %v737
          %739 = vst.msk [vmem:[#allocation2] sm:$0xff] %vm392, %v738
        $region73: #{tpu_custom_call.1} parent=47 // loop_footer
          %s424 = sadd.s32 1, %s420
        $region74: #{tpu_custom_call.1} parent=47 // loop_footer_branch
          %419 = sbr.rel target = $region70
        $region75: #{tpu_custom_call.1} parent=47 // loop_exit
          _
        %v740 = vld [vmem:[#allocation3] sm:$0xff]
        %v741 = vld [vmem:[%s387] sm:$0xff]
        %s742 = sld [smem:[#allocation4]]
        %s743 = sld [smem:[#allocation7]]
        %v744 = vstv %s742
        %v745 = vmul.f32 %v741, %v744
        %v746 = vsub.f32 1.0, %v741
        %s747 = ssub.f32 1.0, %s742
        %v748 = vstv %s747
        %v749 = vmul.f32 %v746, %v748
        %v750 = vadd.f32 %v745, %v749
        %s751 = ssub.f32 1.0, %s743
        %v752 = vstv %s751
        %v753 = vmul.f32 %v741, %v752
        %v754 = vstv %s743
        %v755 = vmul.f32 %v746, %v754
        %v756 = vadd.f32 %v753, %v755
        %s757 = sld [smem:[#allocation4 + $0x1]]
        %s758 = sld [smem:[#allocation7 + $0x1]]
        %v759 = vstv %s757
        %v760 = vmul.f32 %v741, %v759
        %s761 = ssub.f32 1.0, %s757
        %v762 = vstv %s761
        %v763 = vmul.f32 %v746, %v762
        %v764 = vadd.f32 %v760, %v763
        %766 = vrot.lane.b32.xlu0 %v764, 127
        %v767 = vpop.permute.xlu0 %766
        %v769 = vmul.f32 %v750, %v767
        %s770 = ssub.f32 1.0, %s758
        %v771 = vstv %s770
        %v772 = vmul.f32 %v741, %v771
        %v773 = vstv %s758
        %v774 = vmul.f32 %v746, %v773
        %v775 = vadd.f32 %v772, %v774
        %777 = vrot.lane.b32.xlu0 %v775, 127
        %v778 = vpop.permute.xlu0 %777
        %v780 = vmul.f32 %v756, %v778
        %s781 = sld [smem:[#allocation4 + $0x2]]
        %s782 = sld [smem:[#allocation7 + $0x2]]
        %v783 = vstv %s781
        %v784 = vmul.f32 %v741, %v783
        %s785 = ssub.f32 1.0, %s781
        %v786 = vstv %s785
        %v787 = vmul.f32 %v746, %v786
        %v788 = vadd.f32 %v784, %v787
        %790 = vrot.lane.b32.xlu0 %v788, 126
        %v791 = vpop.permute.xlu0 %790
        %v793 = vmul.f32 %v769, %v791
        %s794 = ssub.f32 1.0, %s782
        %v795 = vstv %s794
        %v796 = vmul.f32 %v741, %v795
        %v797 = vstv %s782
        %v798 = vmul.f32 %v746, %v797
        %v799 = vadd.f32 %v796, %v798
        %801 = vrot.lane.b32.xlu0 %v799, 126
        %v802 = vpop.permute.xlu0 %801
        %v804 = vmul.f32 %v780, %v802
        %s805 = sld [smem:[#allocation4 + $0x3]]
        %s806 = sld [smem:[#allocation7 + $0x3]]
        %v807 = vstv %s805
        %v808 = vmul.f32 %v741, %v807
        %s809 = ssub.f32 1.0, %s805
        %v810 = vstv %s809
        %v811 = vmul.f32 %v746, %v810
        %v812 = vadd.f32 %v808, %v811
        %814 = vrot.lane.b32.xlu0 %v812, 125
        %v815 = vpop.permute.xlu0 %814
        %v817 = vmul.f32 %v793, %v815
        %s818 = ssub.f32 1.0, %s806
        %v819 = vstv %s818
        %v820 = vmul.f32 %v741, %v819
        %v821 = vstv %s806
        %v822 = vmul.f32 %v746, %v821
        %v823 = vadd.f32 %v820, %v822
        %825 = vrot.lane.b32.xlu0 %v823, 125
        %v826 = vpop.permute.xlu0 %825
        %v828 = vmul.f32 %v804, %v826
        %s829 = sld [smem:[#allocation4 + $0x4]]
        %s830 = sld [smem:[#allocation7 + $0x4]]
        %v831 = vstv %s829
        %v832 = vmul.f32 %v741, %v831
        %s833 = ssub.f32 1.0, %s829
        %v834 = vstv %s833
        %v835 = vmul.f32 %v746, %v834
        %v836 = vadd.f32 %v832, %v835
        %838 = vrot.lane.b32.xlu0 %v836, 124
        %v839 = vpop.permute.xlu0 %838
        %v841 = vmul.f32 %v817, %v839
        %s842 = ssub.f32 1.0, %s830
        %v843 = vstv %s842
        %v844 = vmul.f32 %v741, %v843
        %v845 = vstv %s830
        %v846 = vmul.f32 %v746, %v845
        %v847 = vadd.f32 %v844, %v846
        %849 = vrot.lane.b32.xlu0 %v847, 124
        %v850 = vpop.permute.xlu0 %849
        %v852 = vmul.f32 %v828, %v850
        %v853 = vmul.f32 %v841, %v740
        %v854 = vsub.f32 1.0, %v740
        %v855 = vmul.f32 %v852, %v854
        %v856 = vadd.f32 %v853, %v855
        %v857 = vrcp.pop %v856
        %v858 = vmul.f32 %v856, %v857
        %v859 = vsub.f32 1.0, %v858
        %v860 = vmul.f32 %v857, %v859
        %v861 = vadd.f32 %v857, %v860
        %vm862 = vweird.f32 %v856
        %vm863 = vweird.f32 %v857
        %vm864 = vmor %vm862, %vm863
        %v865 = vsel %vm864, %v857, %v861
        %v866 = vand.u32 2147483647, %v856
        %vm867 = vcmp.eq.f32.partialorder %v866, 8.507059e+37
        %v868 = vand.u32 %v856, 2147483648
        %v869 = vor.u32 1.1754944e-38, %v868
        %v870 = vsel %vm867, %v869, %v865
        %v871 = vmul.f32 %v853, %v870
        %vm872 = vcmp.lt.f32.partialorder %v871, 0.5
        %v873 = vsel %vm872, 1, 0
        %874 = vset.pattern.permute.xlu0 0
        %875 = vperm.xlu0 %874, %v873
        %v876 = vpop.permute.xlu0 %875
        %vm877 = vcmp.eq.s32.totalorder %v876, 1
        %v878 = vsel %vm877, 0.0, %v397
        %vm879 = vcmask 39936
        %880 = vst.msk [vmem:[%s391] sm:$0xff] %vm879, %v878
        %p881 = scmp.lt.s32.totalorder %s24, 1
        %s882 = scalar_select %p881, %s24, 1
        %s883 = smul.addr %s882, 8
        %s884 = scalar_lea.vmem %s7, %s883
        // Predicated region
        $region76: #{tpu_custom_call.1} parent=47 // pred_check
          %p885 = pneg %p208
        $region77: #{tpu_custom_call.1} parent=47 // pred_check_branch
          %887 = sbr.rel (%p885) target = $region79
        $region78: #{tpu_custom_call.1} parent=47 // pred_region
          _
        $region79: #{tpu_custom_call.1} parent=47 // pred_fallthru
          _
      $region48: #{tpu_custom_call.1} parent=5 // pred_fallthru
        _
      %p888 = scmp.le.s32.totalorder 2, %s19
      // Predicated region
      $region80: #{tpu_custom_call.1} parent=5 // pred_check
        %p889 = pneg %p888
      $region81: #{tpu_custom_call.1} parent=5 // pred_check_branch
        %891 = sbr.rel (%p889) target = $region83
      $region82: #{tpu_custom_call.1} parent=5 // pred_region
        %s892 = ssub.s32 %s19, 2
        // Predicated region
        $region84: #{tpu_custom_call.1} parent=82 // pred_check
          %p893 = pneg %p214
        $region85: #{tpu_custom_call.1} parent=82 // pred_check_branch
          %895 = sbr.rel (%p893) target = $region87
        $region86: #{tpu_custom_call.1} parent=82 // pred_region
          %p896 = scmp.lt.s32.totalorder %s25, 1
          %s897 = scalar_select %p896, %s25, 1
          %s898 = smul.addr %s897, 8
          %s899 = scalar_lea.vmem %s7, %s898
        $region87: #{tpu_custom_call.1} parent=82 // pred_fallthru
          _
      $region83: #{tpu_custom_call.1} parent=5 // pred_fallthru
        _
    $region6: #{tpu_custom_call.1} parent=1 // loop_footer
      %s23 = sadd.s32 1, %s19
    $region7: #{tpu_custom_call.1} parent=1 // loop_footer_branch
      %18 = sbr.rel target = $region3
    $region8: #{tpu_custom_call.1} parent=1 // loop_exit
      _
    %900 = vsyncpa [#allocation5], 1
    %s901 = scalar_lea.sflag [#allocation5], 1
    %902 = vsyncpa %s901, 1
    %903 = vsyncpa [#allocation12], 1
    %s904 = scalar_lea.sflag [#allocation12], 1
    %905 = vsyncpa %s904, 1
    %906 = vsyncpa [#allocation6], 1
    %s907 = scalar_lea.sflag [#allocation6], 1
    %908 = vsyncpa %s907, 1
    %909 = vsyncpa [#allocation8], 1

</llo_original>
